<compile_context>
chip_gen: v5e
topology: v5e:2x2
jax: 0.10.0
libtpu: 0.0.40
codegen_flags: <defaults>
</compile_context>

<pallas_src>
import functools

import jax
import jax.numpy as jnp
from jax.experimental import pallas as pl
from jax.experimental.pallas import tpu as pltpu


_INV_SQRT2 = 0.7071067811865476


def _erf(z):
    """Abramowitz & Stegun 7.1.26 rational erf approximation (|err| < 1.5e-7).

    Built only from VPU/EUP-friendly ops (abs/select/mul/add/div/exp) so it
    lowers cleanly in Mosaic; matches nn.GELU()'s erf-based GELU to ~1e-6.
    """
    a1, a2, a3, a4, a5 = (0.254829592, -0.284496736, 1.421413741,
                          -1.453152027, 1.061405429)
    p = 0.3275911
    sgn = jnp.where(z < 0.0, -1.0, 1.0)
    az = jnp.abs(z)
    t = 1.0 / (1.0 + p * az)
    poly = ((((a5 * t + a4) * t + a3) * t + a2) * t + a1) * t
    return sgn * (1.0 - poly * jnp.exp(-az * az))


def _gelu_exact(x):
    # nn.GELU() default is the exact (erf-based) GELU, approximate='none'.
    return 0.5 * x * (1.0 + _erf(x * _INV_SQRT2))


def _conv_bn_gelu_kernel(*refs, has_residual: bool):
    """One (batch n, L-tile j) grid step of a fused ConvBlock.

    conv1d(k=3, dilated, 'same') as 3 MXU matmuls over pre-shifted tap views,
    + folded (conv bias + inference BatchNorm) per-channel affine,
    + exact GELU, + optional fused residual add.
    """
    if has_residual:
        x0, x1, x2, w0, w1, w2, sc, sh, res, out = refs
    else:
        x0, x1, x2, w0, w1, w2, sc, sh, out = refs
        res = None

    f32 = jnp.float32
    # (C_out, C_in) @ (C_in, TL) -> (C_out, TL), f32 accumulation on the MXU.
    acc = jnp.dot(w0[...], x0[...].astype(f32), preferred_element_type=f32)
    acc = acc + jnp.dot(w1[...], x1[...].astype(f32), preferred_element_type=f32)
    acc = acc + jnp.dot(w2[...], x2[...].astype(f32), preferred_element_type=f32)

    # Per-channel affine = conv bias + inference BatchNorm, folded in wrapper.
    y = _gelu_exact(acc * sc[...] + sh[...])

    if res is not None:
        y = y + res[...].astype(f32)

    out[...] = y.astype(out.dtype)


def _choose_l_tile(L, channels, *, dtype_bytes=4, inflight_tiles=10,
                   vmem_budget=16 * 1024 * 1024, max_tile=1024):
    """Largest lane tile (multiple of 128) dividing L under the VMEM budget."""
    if L % 128 != 0:
        return L          # small / odd L: full-extent block (legal layout)
    cap = vmem_budget // (inflight_tiles * max(1, channels) * dtype_bytes)
    cap = min(max_tile, max(128, (cap // 128) * 128))
    tl = 128
    for t in range(256, min(L, cap) + 1, 128):
        if L % t == 0:
            tl = t
    return tl


def conv_block_forward(x, w, b, gamma, beta, mean, var, *, dilation,
                       eps=1e-5, residual=None):
    """Fused ConvBlock forward: conv1d(k=3, 'same', dilation) -> BN -> GELU.

    `residual` (optional) is added to the activated output, which fuses the
    outer `x + inputs` of dilated_residual into the second block's kernel.
    """
    N, C_in, L = x.shape
    C_out, C_in_w, K = w.shape
    assert C_in_w == C_in and K == 3
    d = int(dilation)
    f32 = jnp.float32

    # Fold conv bias + inference BatchNorm into per-channel scale / shift.
    inv_std = jax.lax.rsqrt(var.astype(f32) + eps)
    scale_v = gamma.astype(f32) * inv_std
    shift_v = beta.astype(f32) + (b.astype(f32) - mean.astype(f32)) * scale_v
    scale = scale_v.reshape(C_out, 1)
    shift = shift_v.reshape(C_out, 1)

    # 'same' zero padding for a width-3 dilated conv, then 3 shifted tap
    # views.  Pre-shifting means every (n, L-tile) grid step is fully
    # independent: no halos, no reduction axis, plain non-overlapping tiles.
    xp = jnp.pad(x, ((0, 0), (0, 0), (d, d)))
    taps = [jax.lax.slice_in_dim(xp, k * d, k * d + L, axis=2) for k in range(3)]
    w_taps = [w[:, :, k].astype(f32) for k in range(3)]          # (C_out, C_in)

    tl = _choose_l_tile(L, max(C_in, C_out))
    grid = (N, L // tl)

    x_spec = pl.BlockSpec((None, C_in, tl), lambda n, j: (n, 0, j))
    w_spec = pl.BlockSpec((C_out, C_in), lambda n, j: (0, 0))
    a_spec = pl.BlockSpec((C_out, 1), lambda n, j: (0, 0))
    o_spec = pl.BlockSpec((None, C_out, tl), lambda n, j: (n, 0, j))

    in_specs = [x_spec, x_spec, x_spec, w_spec, w_spec, w_spec, a_spec, a_spec]
    args = [*taps, *w_taps, scale, shift]
    if residual is not None:
        assert residual.shape == (N, C_out, L)
        in_specs.append(pl.BlockSpec((None, C_out, tl), lambda n, j: (n, 0, j)))
        args.append(residual)

    return pl.pallas_call(
        functools.partial(_conv_bn_gelu_kernel,
                          has_residual=residual is not None),
        out_shape=jax.ShapeDtypeStruct((N, C_out, L), x.dtype),
        grid=grid,
        in_specs=in_specs,
        out_specs=o_spec,
        compiler_params=pltpu.CompilerParams(
            # Both grid axes are fully independent; the leading batch axis
            # lets the two v7x TensorCores take separate work.
            dimension_semantics=("parallel", "parallel"),
            vmem_limit_bytes=32 * 1024 * 1024,
        ),
    )(*args)


def dilated_residual_forward(x, params):
    """dilated_residual.forward: conv1 (dilated) -> conv2 -> + inputs."""
    h = conv_block_forward(
        x, params["w1"], params["b1"], params["gamma1"], params["beta1"],
        params["mean1"], params["var1"], dilation=params["dilation"])
    # The final `x + inputs` is fused into the second ConvBlock's kernel.
    return conv_block_forward(
        h, params["w2"], params["b2"], params["gamma2"], params["beta2"],
        params["mean2"], params["var2"], dilation=1, residual=x)


# ----------------------------- pure-JAX reference ---------------------------

def _ref_conv_block(x, w, b, gamma, beta, mean, var, *, dilation, eps=1e-5):
    f32 = jnp.float32
    N, C_in, L = x.shape
    d = dilation
    xp = jnp.pad(x.astype(f32), ((0, 0), (0, 0), (d, d)))
    y = jnp.zeros((N, w.shape[0], L), f32)
    for k in range(3):
        xs = jax.lax.slice_in_dim(xp, k * d, k * d + L, axis=2)
        y = y + jnp.einsum("oc,ncl->nol", w[:, :, k].astype(f32), xs,
                           precision=jax.lax.Precision.HIGHEST)
    y = y + b.astype(f32)[None, :, None]
    inv_std = jax.lax.rsqrt(var.astype(f32) + eps)
    y = ((y - mean.astype(f32)[None, :, None])
         * (gamma.astype(f32) * inv_std)[None, :, None]
         + beta.astype(f32)[None, :, None])
    return jax.nn.gelu(y, approximate=False)


def _ref_dilated_residual(x, params):
    h = _ref_conv_block(x, params["w1"], params["b1"], params["gamma1"],
                        params["beta1"], params["mean1"], params["var1"],
                        dilation=params["dilation"])
    y = _ref_conv_block(h, params["w2"], params["b2"], params["gamma2"],
                        params["beta2"], params["mean2"], params["var2"],
                        dilation=1)
    return (y + x.astype(jnp.float32)).astype(x.dtype)


if __name__ == "__main__":
    key = jax.random.PRNGKey(0)
    N, C_in, C_mid, L, dilation = 2, 8, 16, 1536, 2
    ks = jax.random.split(key, 13)

    x = jax.random.normal(ks[0], (N, C_in, L), jnp.float32)
    params = dict(
        dilation=dilation,
        w1=0.3 * jax.random.normal(ks[1], (C_mid, C_in, 3), jnp.float32),
        b1=0.1 * jax.random.normal(ks[2], (C_mid,), jnp.float32),
        gamma1=1.0 + 0.1 * jax.random.normal(ks[3], (C_mid,), jnp.float32),
        beta1=0.1 * jax.random.normal(ks[4], (C_mid,), jnp.float32),
        mean1=0.1 * jax.random.normal(ks[5], (C_mid,), jnp.float32),
        var1=0.5 + jax.random.uniform(ks[6], (C_mid,), jnp.float32),
        w2=0.3 * jax.random.normal(ks[7], (C_in, C_mid, 3), jnp.float32),
        b2=0.1 * jax.random.normal(ks[8], (C_in,), jnp.float32),
        gamma2=1.0 + 0.1 * jax.random.normal(ks[9], (C_in,), jnp.float32),
        beta2=0.1 * jax.random.normal(ks[10], (C_in,), jnp.float32),
        mean2=0.1 * jax.random.normal(ks[11], (C_in,), jnp.float32),
        var2=0.5 + jax.random.uniform(ks[12], (C_in,), jnp.float32),
    )

    y = dilated_residual_forward(x, params)
    y = jax.block_until_ready(y)
    assert y.shape == (N, C_in, L)

    ref = _ref_dilated_residual(x, params)
    assert jnp.allclose(y, ref, atol=1e-2, rtol=1e-2), \
        f"max abs err {float(jnp.max(jnp.abs(y - ref)))}"

    print("KERNEL_OK")
</pallas_src>

<mosaic_0001>
module attributes {stable_mosaic.version = 11 : i64} {
  func.func @_conv_bn_gelu_kernel(%arg0: i32, %arg1: i32, %arg2: memref<1x8x768xf32, #tpu.memory_space<vmem>>, %arg3: memref<1x8x768xf32, #tpu.memory_space<vmem>>, %arg4: memref<1x8x768xf32, #tpu.memory_space<vmem>>, %arg5: memref<16x8xf32, #tpu.memory_space<vmem>>, %arg6: memref<16x8xf32, #tpu.memory_space<vmem>>, %arg7: memref<16x8xf32, #tpu.memory_space<vmem>>, %arg8: memref<16x1xf32, #tpu.memory_space<vmem>>, %arg9: memref<16x1xf32, #tpu.memory_space<vmem>>, %arg10: memref<1x16x768xf32, #tpu.memory_space<vmem>>) attributes {dimension_semantics = [#tpu.dimension_semantics<parallel>, #tpu.dimension_semantics<parallel>], iteration_bounds = array<i64: 2, 2>, scalar_prefetch = 0 : i64, scratch_operands = 0 : i64, tpu.core_type = #tpu.core_type<tc>, window_params = [{transform_indices = @transform_0, window_bounds = array<i64: 1, 8, 768>}, {transform_indices = @transform_1, window_bounds = array<i64: 1, 8, 768>}, {transform_indices = @transform_2, window_bounds = array<i64: 1, 8, 768>}, {pipeline_mode = #tpu.pipeline_mode<synchronous>, transform_indices = @transform_3, window_bounds = array<i64: 16, 8>}, {pipeline_mode = #tpu.pipeline_mode<synchronous>, transform_indices = @transform_4, window_bounds = array<i64: 16, 8>}, {pipeline_mode = #tpu.pipeline_mode<synchronous>, transform_indices = @transform_5, window_bounds = array<i64: 16, 8>}, {pipeline_mode = #tpu.pipeline_mode<synchronous>, transform_indices = @transform_6, window_bounds = array<i64: 16, 1>}, {pipeline_mode = #tpu.pipeline_mode<synchronous>, transform_indices = @transform_7, window_bounds = array<i64: 16, 1>}, {transform_indices = @transform_8, window_bounds = array<i64: 1, 16, 768>}]} {
    %c0 = arith.constant 0 : index
    %c0_0 = arith.constant 0 : index
    %0 = vector.load %arg5[%c0, %c0_0] : memref<16x8xf32, #tpu.memory_space<vmem>>, vector<16x8xf32>
    %c0_1 = arith.constant 0 : index
    %c0_2 = arith.constant 0 : index
    %c0_3 = arith.constant 0 : index
    %1 = vector.load %arg2[%c0_1, %c0_2, %c0_3] : memref<1x8x768xf32, #tpu.memory_space<vmem>>, vector<1x8x768xf32>
    %2 = vector.shape_cast %1 : vector<1x8x768xf32> to vector<8x768xf32>
    %cst = arith.constant dense<0.000000e+00> : vector<16x768xf32>
    %3 = tpu.matmul %0, %2, %cst {dimension_numbers = #tpu.dot_dimension_numbers<[1], [0], [0], [1], [0, 0, 1, 1], [], []>} : vector<16x8xf32>, vector<8x768xf32>, vector<16x768xf32> -> vector<16x768xf32>
    %c0_4 = arith.constant 0 : index
    %c0_5 = arith.constant 0 : index
    %4 = vector.load %arg6[%c0_4, %c0_5] : memref<16x8xf32, #tpu.memory_space<vmem>>, vector<16x8xf32>
    %c0_6 = arith.constant 0 : index
    %c0_7 = arith.constant 0 : index
    %c0_8 = arith.constant 0 : index
    %5 = vector.load %arg3[%c0_6, %c0_7, %c0_8] : memref<1x8x768xf32, #tpu.memory_space<vmem>>, vector<1x8x768xf32>
    %6 = vector.shape_cast %5 : vector<1x8x768xf32> to vector<8x768xf32>
    %cst_9 = arith.constant dense<0.000000e+00> : vector<16x768xf32>
    %7 = tpu.matmul %4, %6, %cst_9 {dimension_numbers = #tpu.dot_dimension_numbers<[1], [0], [0], [1], [0, 0, 1, 1], [], []>} : vector<16x8xf32>, vector<8x768xf32>, vector<16x768xf32> -> vector<16x768xf32>
    %8 = arith.addf %3, %7 : vector<16x768xf32>
    %c0_10 = arith.constant 0 : index
    %c0_11 = arith.constant 0 : index
    %9 = vector.load %arg7[%c0_10, %c0_11] : memref<16x8xf32, #tpu.memory_space<vmem>>, vector<16x8xf32>
    %c0_12 = arith.constant 0 : index
    %c0_13 = arith.constant 0 : index
    %c0_14 = arith.constant 0 : index
    %10 = vector.load %arg4[%c0_12, %c0_13, %c0_14] : memref<1x8x768xf32, #tpu.memory_space<vmem>>, vector<1x8x768xf32>
    %11 = vector.shape_cast %10 : vector<1x8x768xf32> to vector<8x768xf32>
    %cst_15 = arith.constant dense<0.000000e+00> : vector<16x768xf32>
    %12 = tpu.matmul %9, %11, %cst_15 {dimension_numbers = #tpu.dot_dimension_numbers<[1], [0], [0], [1], [0, 0, 1, 1], [], []>} : vector<16x8xf32>, vector<8x768xf32>, vector<16x768xf32> -> vector<16x768xf32>
    %13 = arith.addf %8, %12 : vector<16x768xf32>
    %c0_16 = arith.constant 0 : index
    %c0_17 = arith.constant 0 : index
    %14 = vector.load %arg8[%c0_16, %c0_17] : memref<16x1xf32, #tpu.memory_space<vmem>>, vector<16x1xf32>
    %15 = vector.broadcast %14 : vector<16x1xf32> to vector<16x768xf32>
    %16 = arith.mulf %13, %15 : vector<16x768xf32>
    %c0_18 = arith.constant 0 : index
    %c0_19 = arith.constant 0 : index
    %17 = vector.load %arg9[%c0_18, %c0_19] : memref<16x1xf32, #tpu.memory_space<vmem>>, vector<16x1xf32>
    %18 = vector.broadcast %17 : vector<16x1xf32> to vector<16x768xf32>
    %19 = arith.addf %16, %18 : vector<16x768xf32>
    %cst_20 = arith.constant 5.000000e-01 : f32
    %20 = vector.broadcast %cst_20 : f32 to vector<16x768xf32>
    %21 = arith.mulf %20, %19 : vector<16x768xf32>
    %cst_21 = arith.constant 0.707106769 : f32
    %22 = vector.broadcast %cst_21 : f32 to vector<16x768xf32>
    %23 = arith.mulf %19, %22 : vector<16x768xf32>
    %cst_22 = arith.constant 0.000000e+00 : f32
    %24 = vector.broadcast %cst_22 : f32 to vector<16x768xf32>
    %25 = arith.cmpf olt, %23, %24 : vector<16x768xf32>
    %cst_23 = arith.constant -1.000000e+00 : f32
    %cst_24 = arith.constant 1.000000e+00 : f32
    %26 = vector.broadcast %cst_23 : f32 to vector<16x768xf32>
    %27 = vector.broadcast %cst_24 : f32 to vector<16x768xf32>
    %28 = arith.select %25, %26, %27 : vector<16x768xi1>, vector<16x768xf32>
    %29 = math.absf %23 : vector<16x768xf32>
    %cst_25 = arith.constant 0.327591091 : f32
    %30 = vector.broadcast %cst_25 : f32 to vector<16x768xf32>
    %31 = arith.mulf %30, %29 : vector<16x768xf32>
    %cst_26 = arith.constant 1.000000e+00 : f32
    %32 = vector.broadcast %cst_26 : f32 to vector<16x768xf32>
    %33 = arith.addf %32, %31 : vector<16x768xf32>
    %cst_27 = arith.constant 1.000000e+00 : f32
    %34 = vector.broadcast %cst_27 : f32 to vector<16x768xf32>
    %35 = arith.divf %34, %33 : vector<16x768xf32>
    %cst_28 = arith.constant 1.06140542 : f32
    %36 = vector.broadcast %cst_28 : f32 to vector<16x768xf32>
    %37 = arith.mulf %36, %35 : vector<16x768xf32>
    %cst_29 = arith.constant -1.45315206 : f32
    %38 = vector.broadcast %cst_29 : f32 to vector<16x768xf32>
    %39 = arith.addf %37, %38 : vector<16x768xf32>
    %40 = arith.mulf %39, %35 : vector<16x768xf32>
    %cst_30 = arith.constant 1.42141378 : f32
    %41 = vector.broadcast %cst_30 : f32 to vector<16x768xf32>
    %42 = arith.addf %40, %41 : vector<16x768xf32>
    %43 = arith.mulf %42, %35 : vector<16x768xf32>
    %cst_31 = arith.constant -0.284496725 : f32
    %44 = vector.broadcast %cst_31 : f32 to vector<16x768xf32>
    %45 = arith.addf %43, %44 : vector<16x768xf32>
    %46 = arith.mulf %45, %35 : vector<16x768xf32>
    %cst_32 = arith.constant 0.254829586 : f32
    %47 = vector.broadcast %cst_32 : f32 to vector<16x768xf32>
    %48 = arith.addf %46, %47 : vector<16x768xf32>
    %49 = arith.mulf %48, %35 : vector<16x768xf32>
    %cst_33 = arith.constant 0.000000e+00 : f32
    %50 = vector.broadcast %cst_33 : f32 to vector<16x768xf32>
    %51 = arith.subf %50, %29 : vector<16x768xf32>
    %52 = arith.mulf %51, %29 : vector<16x768xf32>
    %53 = math.exp %52 : vector<16x768xf32>
    %54 = arith.mulf %49, %53 : vector<16x768xf32>
    %cst_34 = arith.constant 1.000000e+00 : f32
    %55 = vector.broadcast %cst_34 : f32 to vector<16x768xf32>
    %56 = arith.subf %55, %54 : vector<16x768xf32>
    %57 = arith.mulf %28, %56 : vector<16x768xf32>
    %cst_35 = arith.constant 1.000000e+00 : f32
    %58 = vector.broadcast %cst_35 : f32 to vector<16x768xf32>
    %59 = arith.addf %58, %57 : vector<16x768xf32>
    %60 = arith.mulf %21, %59 : vector<16x768xf32>
    %c0_36 = arith.constant 0 : index
    %c0_37 = arith.constant 0 : index
    %c0_38 = arith.constant 0 : index
    %61 = vector.load %arg10[%c0_36, %c0_37, %c0_38] : memref<1x16x768xf32, #tpu.memory_space<vmem>>, vector<1x16x768xf32>
    %62 = vector.shape_cast %61 : vector<1x16x768xf32> to vector<16x768xf32>
    %63 = vector.shape_cast %60 : vector<16x768xf32> to vector<1x16x768xf32>
    tpu.vector_store %arg10[%c0_36, %c0_37, %c0_38], %63 {strides = array<i32>} : memref<1x16x768xf32, #tpu.memory_space<vmem>>, vector<1x16x768xf32>,
    return
  }
  func.func @transform_0(%arg0: i32, %arg1: i32) -> (i32, i32, i32) {
    %c0_i32 = arith.constant 0 : i32
    %c0_i32_0 = arith.constant 0 : i32
    return %arg0, %c0_i32, %arg1 : i32, i32, i32
  }
  func.func @transform_1(%arg0: i32, %arg1: i32) -> (i32, i32, i32) {
    %c0_i32 = arith.constant 0 : i32
    %c0_i32_0 = arith.constant 0 : i32
    return %arg0, %c0_i32, %arg1 : i32, i32, i32
  }
  func.func @transform_2(%arg0: i32, %arg1: i32) -> (i32, i32, i32) {
    %c0_i32 = arith.constant 0 : i32
    %c0_i32_0 = arith.constant 0 : i32
    return %arg0, %c0_i32, %arg1 : i32, i32, i32
  }
  func.func @transform_3(%arg0: i32, %arg1: i32) -> (i32, i32) {
    %c0_i32 = arith.constant 0 : i32
    %c0_i32_0 = arith.constant 0 : i32
    %c0_i32_1 = arith.constant 0 : i32
    return %c0_i32, %c0_i32_0 : i32, i32
  }
  func.func @transform_4(%arg0: i32, %arg1: i32) -> (i32, i32) {
    %c0_i32 = arith.constant 0 : i32
    %c0_i32_0 = arith.constant 0 : i32
    %c0_i32_1 = arith.constant 0 : i32
    return %c0_i32, %c0_i32_0 : i32, i32
  }
  func.func @transform_5(%arg0: i32, %arg1: i32) -> (i32, i32) {
    %c0_i32 = arith.constant 0 : i32
    %c0_i32_0 = arith.constant 0 : i32
    %c0_i32_1 = arith.constant 0 : i32
    return %c0_i32, %c0_i32_0 : i32, i32
  }
  func.func @transform_6(%arg0: i32, %arg1: i32) -> (i32, i32) {
    %c0_i32 = arith.constant 0 : i32
    %c0_i32_0 = arith.constant 0 : i32
    %c0_i32_1 = arith.constant 0 : i32
    return %c0_i32, %c0_i32_0 : i32, i32
  }
  func.func @transform_7(%arg0: i32, %arg1: i32) -> (i32, i32) {
    %c0_i32 = arith.constant 0 : i32
    %c0_i32_0 = arith.constant 0 : i32
    %c0_i32_1 = arith.constant 0 : i32
    return %c0_i32, %c0_i32_0 : i32, i32
  }
  func.func @transform_8(%arg0: i32, %arg1: i32) -> (i32, i32, i32) {
    %c0_i32 = arith.constant 0 : i32
    %c0_i32_0 = arith.constant 0 : i32
    return %arg0, %c0_i32, %arg1 : i32, i32, i32
  }
}

</mosaic_0001>

<llo_original>
// kernel: tpu_custom_call.1
$region0: #{tpu_custom_call.1}
  #allocation0 [shape = 'u32[]', space=smem, size = 0x4, offset = 0x4, fixed_abs, tag = 'smem constant byte address 0x4 - core index']
  #allocation1 [shape = 'u32[72,128]{1,0:T(1,128)}', space=vmem, size = 0x9000, scoped, tag = 'internal scratch']
  %s0 = inlined_call_operand.hbm [shape: f32[2,8,1536], index: 0, kind: input, shape index: {}]
  %s1 = inlined_call_operand.hbm [shape: f32[2,8,1536], index: 1, kind: input, shape index: {}]
  %s2 = inlined_call_operand.hbm [shape: f32[2,8,1536], index: 2, kind: input, shape index: {}]
  %s3 = inlined_call_operand.vmem [shape: f32[16,8], index: 3, kind: input, shape index: {}]
  %s4 = inlined_call_operand.vmem [shape: f32[16,8], index: 4, kind: input, shape index: {}]
  %s5 = inlined_call_operand.vmem [shape: f32[16,8], index: 5, kind: input, shape index: {}]
  %s6 = inlined_call_operand.vmem [shape: f32[16,1], index: 6, kind: input, shape index: {}]
  %s7 = inlined_call_operand.vmem [shape: f32[16,1], index: 7, kind: input, shape index: {}]
  %s8 = inlined_call_operand.hbm [shape: f32[2,16,1536], index: 8, kind: output, shape index: {}]
  %s9 = sld [smem:[#allocation0]]
  $region77: #{tpu_custom_call.1} parent=0
    _
  %s11 = ssub.s32 1, %s9
  %s12 = scalar_select 0, %s11, %s9
  $region1: #{tpu_custom_call.1} parent=0
    #allocation2 [shape = 'u8[49152]{0}', space=vmem, size = 0xc000, scoped, tag = 'input window, operand 0']
    #allocation3 [shape = 's32[2]{0}', space=sflag, size = 0x8, scoped, tag = 'scoped memory for tpu_custom_call.1']
    #allocation4 [shape = 's32[2]{0}', space=sflag, size = 0x8, scoped, tag = 'scoped memory for tpu_custom_call.1']
    #allocation5 [shape = 'u8[49152]{0}', space=vmem, size = 0xc000, scoped, tag = 'input window, operand 1']
    #allocation6 [shape = 's32[2]{0}', space=sflag, size = 0x8, scoped, tag = 'scoped memory for tpu_custom_call.1']
    #allocation7 [shape = 'u8[49152]{0}', space=vmem, size = 0xc000, scoped, tag = 'input window, operand 2']
    #allocation8 [shape = 'u8[98304]{0}', space=vmem, size = 0x18000, scoped, tag = 'output window, operand 0']
    %13 = vsyncpa [#allocation3], 0
    %s14 = scalar_lea.sflag [#allocation3], 1
    %15 = vsyncpa %s14, 0
    %16 = vsyncpa [#allocation6], 0
    %s17 = scalar_lea.sflag [#allocation6], 1
    %18 = vsyncpa %s17, 0
    %19 = vsyncpa [#allocation4], 0
    %s20 = scalar_lea.sflag [#allocation4], 1
    %21 = vsyncpa %s20, 0
    loop: start=0, step=1, limit=6
    $region2: #{tpu_custom_call.1} parent=1 // loop_pre_header
      _
    $region3: #{tpu_custom_call.1} parent=1 // loop_header
      %s23 = sphi 0, %s27
      %p24 = scmp.ge.s32.totalorder %s23, 6
      %s30 = sphi 0, %s42
      %s31 = sphi 0, %s38
      %s32 = sphi 0, %s30
      %s33 = sphi 0, %s31
      %s34 = sphi 0, %s32
      %s35 = sphi 0, %s33
      %s47 = sphi 0, %s49
      %s50 = sphi 0, %s47
      %s51 = sphi 0, %s50
      %s67 = sphi 0, %s51
      %s75 = sphi 0, %s77
      %s78 = sphi 0, %s75
      %s79 = sphi 0, %s78
      %s95 = sphi 0, %s79
      %s103 = sphi 0, %s105
      %s106 = sphi 0, %s103
      %s107 = sphi 0, %s106
      %s123 = sphi 0, %s107
      %s127 = sphi 0, %s127
      %s129 = sphi 0, %s127
      %s130 = sphi 0, %s129
      %s144 = sphi 0, %s130
      %s148 = sphi 0, %s148
      %s150 = sphi 0, %s148
      %s151 = sphi 0, %s150
      %s165 = sphi 0, %s151
      %s169 = sphi 0, %s169
      %s171 = sphi 0, %s169
      %s172 = sphi 0, %s171
      %s186 = sphi 0, %s172
      %s190 = sphi 0, %s190
      %s192 = sphi 0, %s190
      %s193 = sphi 0, %s192
      %s207 = sphi 0, %s193
      %s211 = sphi 0, %s211
      %s213 = sphi 0, %s211
      %s214 = sphi 0, %s213
      %s228 = sphi 0, %s214
      %s236 = sphi 0, %s238
      %s239 = sphi 0, %s236
      %s240 = sphi 0, %s239
      %s256 = sphi 0, %s240
    $region4: #{tpu_custom_call.1} parent=1 // loop_header_branch
      %26 = sbr.rel (%p24) target = $region8
    $region5: #{tpu_custom_call.1} parent=1 // loop_body
      %s28 = ssub.s32 %s23, 1
      %s29 = ssub.s32 %s23, 2
      %s36 = sadd.s32 1, %s31
      %p37 = scmp.ge.s32.totalorder %s36, 2
      %s38 = scalar_select %p37, 0, %s36
      %s39 = sadd.s32 1, %s30
      %s40 = scalar_select %p37, %s39, %s30
      %p41 = scmp.ge.s32.totalorder %s40, 2
      %s42 = scalar_select %p41, 0, %s40
      %s43 = ssub.s32 %s30, %s42
      %s44 = ssub.s32 %s31, %s38
      %s45 = sor.u32 %s43, %s44
      %p46 = scmp.eq.s32.totalorder %s45, 0
      %s48 = sadd.s32 %s47, 1
      %s49 = scalar_select %p46, %s47, %s48
      %p52 = pneg %p46
      %p53 = scmp.eq.s32.totalorder %s23, 3
      %p54 = por %p52, %p53
      %p55 = scmp.ne.s32.totalorder %s47, %s50
      %p56 = scmp.eq.s32.totalorder %s23, 0
      %p57 = por %p55, %p56
      %p58 = scmp.ne.s32.totalorder %s47, %s50
      %p59 = scmp.eq.s32.totalorder %s28, 3
      %p60 = por %p58, %p59
      %p61 = scmp.ne.s32.totalorder %s50, %s51
      %p62 = scmp.eq.s32.totalorder %s28, 0
      %p63 = por %p61, %p62
      %p64 = scmp.ne.s32.totalorder %s50, %s51
      %p65 = scmp.eq.s32.totalorder %s29, 3
      %p66 = por %p64, %p65
      %p68 = scmp.ne.s32.totalorder %s51, %s67
      %p69 = scmp.eq.s32.totalorder %s29, 0
      %p70 = por %p68, %p69
      %s71 = ssub.s32 %s30, %s42
      %s72 = ssub.s32 %s31, %s38
      %s73 = sor.u32 %s71, %s72
      %p74 = scmp.eq.s32.totalorder %s73, 0
      %s76 = sadd.s32 %s75, 1
      %s77 = scalar_select %p74, %s75, %s76
      %p80 = pneg %p74
      %p81 = scmp.eq.s32.totalorder %s23, 3
      %p82 = por %p80, %p81
      %p83 = scmp.ne.s32.totalorder %s75, %s78
      %p84 = scmp.eq.s32.totalorder %s23, 0
      %p85 = por %p83, %p84
      %p86 = scmp.ne.s32.totalorder %s75, %s78
      %p87 = scmp.eq.s32.totalorder %s28, 3
      %p88 = por %p86, %p87
      %p89 = scmp.ne.s32.totalorder %s78, %s79
      %p90 = scmp.eq.s32.totalorder %s28, 0
      %p91 = por %p89, %p90
      %p92 = scmp.ne.s32.totalorder %s78, %s79
      %p93 = scmp.eq.s32.totalorder %s29, 3
      %p94 = por %p92, %p93
      %p96 = scmp.ne.s32.totalorder %s79, %s95
      %p97 = scmp.eq.s32.totalorder %s29, 0
      %p98 = por %p96, %p97
      %s99 = ssub.s32 %s30, %s42
      %s100 = ssub.s32 %s31, %s38
      %s101 = sor.u32 %s99, %s100
      %p102 = scmp.eq.s32.totalorder %s101, 0
      %s104 = sadd.s32 %s103, 1
      %s105 = scalar_select %p102, %s103, %s104
      %p108 = pneg %p102
      %p109 = scmp.eq.s32.totalorder %s23, 3
      %p110 = por %p108, %p109
      %p111 = scmp.ne.s32.totalorder %s103, %s106
      %p112 = scmp.eq.s32.totalorder %s23, 0
      %p113 = por %p111, %p112
      %p114 = scmp.ne.s32.totalorder %s103, %s106
      %p115 = scmp.eq.s32.totalorder %s28, 3
      %p116 = por %p114, %p115
      %p117 = scmp.ne.s32.totalorder %s106, %s107
      %p118 = scmp.eq.s32.totalorder %s28, 0
      %p119 = por %p117, %p118
      %p120 = scmp.ne.s32.totalorder %s106, %s107
      %p121 = scmp.eq.s32.totalorder %s29, 3
      %p122 = por %p120, %p121
      %p124 = scmp.ne.s32.totalorder %s107, %s123
      %p125 = scmp.eq.s32.totalorder %s29, 0
      %p126 = por %p124, %p125
      %s128 = sadd.s32 %s127, 1
      %p131 = scmp.eq.s32.totalorder %s23, 3
      %p132 = scmp.ne.s32.totalorder %s127, %s129
      %p133 = scmp.eq.s32.totalorder %s23, 0
      %p134 = por %p132, %p133
      %p135 = scmp.ne.s32.totalorder %s127, %s129
      %p136 = scmp.eq.s32.totalorder %s28, 3
      %p137 = por %p135, %p136
      %p138 = scmp.ne.s32.totalorder %s129, %s130
      %p139 = scmp.eq.s32.totalorder %s28, 0
      %p140 = por %p138, %p139
      %p141 = scmp.ne.s32.totalorder %s129, %s130
      %p142 = scmp.eq.s32.totalorder %s29, 3
      %p143 = por %p141, %p142
      %p145 = scmp.ne.s32.totalorder %s130, %s144
      %p146 = scmp.eq.s32.totalorder %s29, 0
      %p147 = por %p145, %p146
      %s149 = sadd.s32 %s148, 1
      %p152 = scmp.eq.s32.totalorder %s23, 3
      %p153 = scmp.ne.s32.totalorder %s148, %s150
      %p154 = scmp.eq.s32.totalorder %s23, 0
      %p155 = por %p153, %p154
      %p156 = scmp.ne.s32.totalorder %s148, %s150
      %p157 = scmp.eq.s32.totalorder %s28, 3
      %p158 = por %p156, %p157
      %p159 = scmp.ne.s32.totalorder %s150, %s151
      %p160 = scmp.eq.s32.totalorder %s28, 0
      %p161 = por %p159, %p160
      %p162 = scmp.ne.s32.totalorder %s150, %s151
      %p163 = scmp.eq.s32.totalorder %s29, 3
      %p164 = por %p162, %p163
      %p166 = scmp.ne.s32.totalorder %s151, %s165
      %p167 = scmp.eq.s32.totalorder %s29, 0
      %p168 = por %p166, %p167
      %s170 = sadd.s32 %s169, 1
      %p173 = scmp.eq.s32.totalorder %s23, 3
      %p174 = scmp.ne.s32.totalorder %s169, %s171
      %p175 = scmp.eq.s32.totalorder %s23, 0
      %p176 = por %p174, %p175
      %p177 = scmp.ne.s32.totalorder %s169, %s171
      %p178 = scmp.eq.s32.totalorder %s28, 3
      %p179 = por %p177, %p178
      %p180 = scmp.ne.s32.totalorder %s171, %s172
      %p181 = scmp.eq.s32.totalorder %s28, 0
      %p182 = por %p180, %p181
      %p183 = scmp.ne.s32.totalorder %s171, %s172
      %p184 = scmp.eq.s32.totalorder %s29, 3
      %p185 = por %p183, %p184
      %p187 = scmp.ne.s32.totalorder %s172, %s186
      %p188 = scmp.eq.s32.totalorder %s29, 0
      %p189 = por %p187, %p188
      %s191 = sadd.s32 %s190, 1
      %p194 = scmp.eq.s32.totalorder %s23, 3
      %p195 = scmp.ne.s32.totalorder %s190, %s192
      %p196 = scmp.eq.s32.totalorder %s23, 0
      %p197 = por %p195, %p196
      %p198 = scmp.ne.s32.totalorder %s190, %s192
      %p199 = scmp.eq.s32.totalorder %s28, 3
      %p200 = por %p198, %p199
      %p201 = scmp.ne.s32.totalorder %s192, %s193
      %p202 = scmp.eq.s32.totalorder %s28, 0
      %p203 = por %p201, %p202
      %p204 = scmp.ne.s32.totalorder %s192, %s193
      %p205 = scmp.eq.s32.totalorder %s29, 3
      %p206 = por %p204, %p205
      %p208 = scmp.ne.s32.totalorder %s193, %s207
      %p209 = scmp.eq.s32.totalorder %s29, 0
      %p210 = por %p208, %p209
      %s212 = sadd.s32 %s211, 1
      %p215 = scmp.eq.s32.totalorder %s23, 3
      %p216 = scmp.ne.s32.totalorder %s211, %s213
      %p217 = scmp.eq.s32.totalorder %s23, 0
      %p218 = por %p216, %p217
      %p219 = scmp.ne.s32.totalorder %s211, %s213
      %p220 = scmp.eq.s32.totalorder %s28, 3
      %p221 = por %p219, %p220
      %p222 = scmp.ne.s32.totalorder %s213, %s214
      %p223 = scmp.eq.s32.totalorder %s28, 0
      %p224 = por %p222, %p223
      %p225 = scmp.ne.s32.totalorder %s213, %s214
      %p226 = scmp.eq.s32.totalorder %s29, 3
      %p227 = por %p225, %p226
      %p229 = scmp.ne.s32.totalorder %s214, %s228
      %p230 = scmp.eq.s32.totalorder %s29, 0
      %p231 = por %p229, %p230
      %s232 = ssub.s32 %s30, %s42
      %s233 = ssub.s32 %s31, %s38
      %s234 = sor.u32 %s232, %s233
      %p235 = scmp.eq.s32.totalorder %s234, 0
      %s237 = sadd.s32 %s236, 1
      %s238 = scalar_select %p235, %s236, %s237
      %p241 = pneg %p235
      %p242 = scmp.eq.s32.totalorder %s23, 3
      %p243 = por %p241, %p242
      %p244 = scmp.ne.s32.totalorder %s236, %s239
      %p245 = scmp.eq.s32.totalorder %s23, 0
      %p246 = por %p244, %p245
      %p247 = scmp.ne.s32.totalorder %s236, %s239
      %p248 = scmp.eq.s32.totalorder %s28, 3
      %p249 = por %p247, %p248
      %p250 = scmp.ne.s32.totalorder %s239, %s240
      %p251 = scmp.eq.s32.totalorder %s28, 0
      %p252 = por %p250, %p251
      %p253 = scmp.ne.s32.totalorder %s239, %s240
      %p254 = scmp.eq.s32.totalorder %s29, 3
      %p255 = por %p253, %p254
      %p257 = scmp.ne.s32.totalorder %s240, %s256
      %p258 = scmp.eq.s32.totalorder %s29, 0
      %p259 = por %p257, %p258
      %p260 = scmp.le.s32.totalorder 1, %s23
      %p261 = scmp.lt.s32.totalorder %s23, 5
      %p262 = pnand %p260, %p261
      %p263 = pneg %p262
      // Predicated region
      $region9: #{tpu_custom_call.1} parent=5 // pred_check
        _
      $region10: #{tpu_custom_call.1} parent=5 // pred_check_branch
        %265 = sbr.rel (%p262) target = $region12
      $region11: #{tpu_custom_call.1} parent=5 // pred_region
        %s266 = ssub.s32 %s23, 1
        // Predicated region
        $region13: #{tpu_custom_call.1} parent=11 // pred_check
          %p267 = pneg %p140
        $region14: #{tpu_custom_call.1} parent=11 // pred_check_branch
          %269 = sbr.rel (%p267) target = $region16
        $region15: #{tpu_custom_call.1} parent=11 // pred_region
          _
        $region16: #{tpu_custom_call.1} parent=11 // pred_fallthru
          _
        // Predicated region
        $region17: #{tpu_custom_call.1} parent=11 // pred_check
          %p270 = pneg %p161
        $region18: #{tpu_custom_call.1} parent=11 // pred_check_branch
          %272 = sbr.rel (%p270) target = $region20
        $region19: #{tpu_custom_call.1} parent=11 // pred_region
          _
        $region20: #{tpu_custom_call.1} parent=11 // pred_fallthru
          _
        // Predicated region
        $region21: #{tpu_custom_call.1} parent=11 // pred_check
          %p273 = pneg %p182
        $region22: #{tpu_custom_call.1} parent=11 // pred_check_branch
          %275 = sbr.rel (%p273) target = $region24
        $region23: #{tpu_custom_call.1} parent=11 // pred_region
          _
        $region24: #{tpu_custom_call.1} parent=11 // pred_fallthru
          _
        // Predicated region
        $region25: #{tpu_custom_call.1} parent=11 // pred_check
          %p276 = pneg %p203
        $region26: #{tpu_custom_call.1} parent=11 // pred_check_branch
          %278 = sbr.rel (%p276) target = $region28
        $region27: #{tpu_custom_call.1} parent=11 // pred_region
          _
        $region28: #{tpu_custom_call.1} parent=11 // pred_fallthru
          _
        // Predicated region
        $region29: #{tpu_custom_call.1} parent=11 // pred_check
          %p279 = pneg %p224
        $region30: #{tpu_custom_call.1} parent=11 // pred_check_branch
          %281 = sbr.rel (%p279) target = $region32
        $region31: #{tpu_custom_call.1} parent=11 // pred_region
          _
        $region32: #{tpu_custom_call.1} parent=11 // pred_fallthru
          _
      $region12: #{tpu_custom_call.1} parent=5 // pred_fallthru
        _
      %p282 = scmp.lt.s32.totalorder %s23, 4
      // Predicated region
      $region33: #{tpu_custom_call.1} parent=5 // pred_check
        %p283 = pneg %p282
      $region34: #{tpu_custom_call.1} parent=5 // pred_check_branch
        %285 = sbr.rel (%p283) target = $region36
      $region35: #{tpu_custom_call.1} parent=5 // pred_region
        // Predicated region
        $region37: #{tpu_custom_call.1} parent=35 // pred_check
          %p286 = pneg %p57
        $region38: #{tpu_custom_call.1} parent=35 // pred_check_branch
          %288 = sbr.rel (%p286) target = $region40
        $region39: #{tpu_custom_call.1} parent=35 // pred_region
          %s289 = sand.u32 %s47, 1
          %s290 = scalar_lea.sflag [#allocation3], %s289
          %s291 = sand.u32 %s47, 1
          %s292 = smul.addr %s291, 48
          %s293 = scalar_lea.vmem [#allocation2], %s292
          %s294 = smul.u32 6, %s31
          %296 = vsyncadd %s290, 0
          %s297 = smul.addr %s30, 12
          %s298 = sadd.s32 %s294, %s297
          %s299 = smul.addr %s298, 8
          %s300 = scalar_lea.hbm %s0, %s299
          %s302 = sshll.u32 %s300, 4
          %s303 = int_to_ptr.hbm [resolvable:$true] %s302
          %s304 = sshll.u32 %s293, 4
          %s305 = int_to_ptr.vmem [resolvable:$true] %s304
          %307 = dma.hbm_to_vmem [thread:$0]  %s303, 768, %s305, %s290
        $region40: #{tpu_custom_call.1} parent=35 // pred_fallthru
          _
        // Predicated region
        $region41: #{tpu_custom_call.1} parent=35 // pred_check
          %p308 = pneg %p85
        $region42: #{tpu_custom_call.1} parent=35 // pred_check_branch
          %310 = sbr.rel (%p308) target = $region44
        $region43: #{tpu_custom_call.1} parent=35 // pred_region
          %s311 = sand.u32 %s23, 1
          %s312 = scalar_lea.sflag [#allocation6], %s311
          %s313 = sand.u32 %s75, 1
          %s314 = smul.addr %s313, 48
          %s315 = scalar_lea.vmem [#allocation5], %s314
          %s316 = smul.u32 6, %s31
          %318 = vsyncadd %s312, 0
          %s319 = smul.addr %s30, 12
          %s320 = sadd.s32 %s316, %s319
          %s321 = smul.addr %s320, 8
          %s322 = scalar_lea.hbm %s1, %s321
          %s324 = sshll.u32 %s322, 4
          %s325 = int_to_ptr.hbm [resolvable:$true] %s324
          %s326 = sshll.u32 %s315, 4
          %s327 = int_to_ptr.vmem [resolvable:$true] %s326
          %329 = dma.hbm_to_vmem [thread:$0]  %s325, 768, %s327, %s312
        $region44: #{tpu_custom_call.1} parent=35 // pred_fallthru
          _
        // Predicated region
        $region45: #{tpu_custom_call.1} parent=35 // pred_check
          %p330 = pneg %p113
        $region46: #{tpu_custom_call.1} parent=35 // pred_check_branch
          %332 = sbr.rel (%p330) target = $region48
        $region47: #{tpu_custom_call.1} parent=35 // pred_region
          %s333 = sand.u32 %s23, 1
          %s334 = scalar_lea.sflag [#allocation6], %s333
          %s335 = sand.u32 %s103, 1
          %s336 = smul.addr %s335, 48
          %s337 = scalar_lea.vmem [#allocation7], %s336
          %s338 = smul.u32 6, %s31
          %340 = vsyncadd %s334, 0
          %s341 = smul.addr %s30, 12
          %s342 = sadd.s32 %s338, %s341
          %s343 = smul.addr %s342, 8
          %s344 = scalar_lea.hbm %s2, %s343
          %s346 = sshll.u32 %s344, 4
          %s347 = int_to_ptr.hbm [resolvable:$true] %s346
          %s348 = sshll.u32 %s337, 4
          %s349 = int_to_ptr.vmem [resolvable:$true] %s348
          %351 = dma.hbm_to_vmem [thread:$0]  %s347, 768, %s349, %s334
        $region48: #{tpu_custom_call.1} parent=35 // pred_fallthru
          _
      $region36: #{tpu_custom_call.1} parent=5 // pred_fallthru
        _
      %p352 = scmp.le.s32.totalorder 1, %s23
      %p353 = scmp.lt.s32.totalorder %s23, 5
      %p354 = pnand %p352, %p353
      %p355 = pneg %p354
      // Predicated region
      $region49: #{tpu_custom_call.1} parent=5 // pred_check
        _
      $region50: #{tpu_custom_call.1} parent=5 // pred_check_branch
        %357 = sbr.rel (%p354) target = $region52
      $region51: #{tpu_custom_call.1} parent=5 // pred_region
        %s358 = ssub.s32 %s23, 1
        %s359 = sand.u32 %s50, 1
        %s360 = scalar_lea.sflag [#allocation3], %s359
        %s361 = sand.u32 %s50, 1
        %s362 = smul.addr %s361, 48
        %s363 = scalar_lea.vmem [#allocation2], %s362
        // Predicated region
        $region53: #{tpu_custom_call.1} parent=51 // pred_check
          %p364 = pneg %p63
        $region54: #{tpu_custom_call.1} parent=51 // pred_check_branch
          %366 = sbr.rel (%p364) target = $region56
        $region55: #{tpu_custom_call.1} parent=51 // pred_region
          %368 = dma.done %s360, 768
        $region56: #{tpu_custom_call.1} parent=51 // pred_fallthru
          _
        %s369 = sand.u32 %s28, 1
        %s370 = scalar_lea.sflag [#allocation6], %s369
        %s371 = sand.u32 %s78, 1
        %s372 = smul.addr %s371, 48
        %s373 = scalar_lea.vmem [#allocation5], %s372
        // Predicated region
        $region57: #{tpu_custom_call.1} parent=51 // pred_check
          %p374 = pneg %p91
        $region58: #{tpu_custom_call.1} parent=51 // pred_check_branch
          %376 = sbr.rel (%p374) target = $region60
        $region59: #{tpu_custom_call.1} parent=51 // pred_region
          %378 = dma.done %s370, 768
        $region60: #{tpu_custom_call.1} parent=51 // pred_fallthru
          _
        %s379 = sand.u32 %s28, 1
        %s380 = scalar_lea.sflag [#allocation6], %s379
        %s381 = sand.u32 %s106, 1
        %s382 = smul.addr %s381, 48
        %s383 = scalar_lea.vmem [#allocation7], %s382
        // Predicated region
        $region61: #{tpu_custom_call.1} parent=51 // pred_check
          %p384 = pneg %p119
        $region62: #{tpu_custom_call.1} parent=51 // pred_check_branch
          %386 = sbr.rel (%p384) target = $region64
        $region63: #{tpu_custom_call.1} parent=51 // pred_region
          %388 = dma.done %s380, 768
        $region64: #{tpu_custom_call.1} parent=51 // pred_fallthru
          _
        %s389 = sand.u32 %s50, 1
        %s390 = scalar_lea.sflag [#allocation3], %s389
        %s391 = sand.u32 %s50, 1
        %s392 = smul.addr %s391, 48
        %s393 = scalar_lea.vmem [#allocation2], %s392
        %p394 = pneg %p63
        %p395 = pneg %p60
        %s396 = sand.u32 %s28, 1
        %s397 = scalar_lea.sflag [#allocation6], %s396
        %s398 = sand.u32 %s78, 1
        %s399 = smul.addr %s398, 48
        %s400 = scalar_lea.vmem [#allocation5], %s399
        %p401 = pneg %p91
        %p402 = pneg %p88
        %s403 = sand.u32 %s28, 1
        %s404 = scalar_lea.sflag [#allocation6], %s403
        %s405 = sand.u32 %s106, 1
        %s406 = smul.addr %s405, 48
        %s407 = scalar_lea.vmem [#allocation7], %s406
        %p408 = pneg %p119
        %p409 = pneg %p116
        %p410 = pneg %p140
        %p411 = pneg %p137
        %p412 = pneg %p161
        %p413 = pneg %p158
        %p414 = pneg %p182
        %p415 = pneg %p179
        %p416 = pneg %p203
        %p417 = pneg %p200
        %p418 = pneg %p224
        %p419 = pneg %p221
        %p420 = pneg %p252
        %p421 = pneg %p249
        %s422 = sand.u32 %s239, 1
        %s423 = scalar_lea.sflag [#allocation4], %s422
        %s424 = sand.u32 %s239, 1
        %s425 = smul.addr %s424, 96
        %s426 = scalar_lea.vmem [#allocation8], %s425
        %s427 = smul.u32 6, %s33
        %s428 = smul.u32 6, %s33
        %s429 = smul.u32 6, %s33
        %s430 = smul.u32 6, %s33
        %v431 = vld [vmem:[%s3] sm:$0xff]
        %v432 = vld [vmem:[%s3 + $0x8] sm:$0xff]
        %v433 = vld [vmem:[%s363] sm:$0xff]
        %v434 = vld [vmem:[%s363 + $0x8] sm:$0xff]
        %v435 = vld [vmem:[%s363 + $0x10] sm:$0xff]
        %v436 = vld [vmem:[%s363 + $0x18] sm:$0xff]
        %v437 = vld [vmem:[%s363 + $0x20] sm:$0xff]
        %v438 = vld [vmem:[%s363 + $0x28] sm:$0xff]
        %v439 = vld [vmem:[%s4] sm:$0xff]
        %v440 = vld [vmem:[%s4 + $0x8] sm:$0xff]
        %v441 = vld [vmem:[%s373] sm:$0xff]
        %v442 = vld [vmem:[%s373 + $0x8] sm:$0xff]
        %v443 = vld [vmem:[%s373 + $0x10] sm:$0xff]
        %v444 = vld [vmem:[%s373 + $0x18] sm:$0xff]
        %v445 = vld [vmem:[%s373 + $0x20] sm:$0xff]
        %v446 = vld [vmem:[%s373 + $0x28] sm:$0xff]
        %vm447 = vcmask 64512
        %v449 = vsel %vm447, %v439, 0
        %v452 = vsel %vm447, %v440, 0
        %454 = vmatpush.msra.mxu0 0.0
        %455 = vmatpush.msra.mxu0 0.0
        %456 = vmatpush.msra.mxu0 0.0
        %457 = vmatpush.msra.mxu0 0.0
        %458 = vmatpush.msra.mxu0 0.0
        %459 = vmatpush.msra.mxu0 0.0
        %460 = vmatpush.msra.mxu0 0.0
        %461 = vmatpush.msra.mxu0 0.0
        %462 = vmatpush.msra.mxu0 0.0
        %463 = vmatpush.msra.mxu0 0.0
        %464 = vmatpush.msra.mxu0 0.0
        %465 = vmatpush.msra.mxu0 0.0
        %466 = vmatpush.msra.mxu0 0.0
        %467 = vmatpush.msra.mxu0 0.0
        %468 = vmatpush.msra.mxu0 0.0
        %469 = vmatpush.msra.mxu0 %v441
        %470 = vmatmul.f32.gmra.mxu0 %v449
        %v471 = vpop.f32.mrf.mxu0
        %v472 = vadd.f32 0.0, %v471
        %473 = vmatmul.f32.gmra.mxu0 %v452
        %v474 = vpop.f32.mrf.mxu0
        %v475 = vadd.f32 0.0, %v474
        %476 = vdwg.mxu0
        %477 = vmatpush.msra.mxu0 0.0
        %478 = vmatpush.msra.mxu0 0.0
        %479 = vmatpush.msra.mxu0 0.0
        %480 = vmatpush.msra.mxu0 0.0
        %481 = vmatpush.msra.mxu0 0.0
        %482 = vmatpush.msra.mxu0 0.0
        %483 = vmatpush.msra.mxu0 0.0
        %484 = vmatpush.msra.mxu0 0.0
        %485 = vmatpush.msra.mxu0 0.0
        %486 = vmatpush.msra.mxu0 0.0
        %487 = vmatpush.msra.mxu0 0.0
        %488 = vmatpush.msra.mxu0 0.0
        %489 = vmatpush.msra.mxu0 0.0
        %490 = vmatpush.msra.mxu0 0.0
        %491 = vmatpush.msra.mxu0 0.0
        %492 = vmatpush.msra.mxu0 %v442
        %493 = vmatmul.f32.gmra.mxu0 %v449
        %v494 = vpop.f32.mrf.mxu0
        %v495 = vadd.f32 0.0, %v494
        %496 = vmatmul.f32.gmra.mxu0 %v452
        %v497 = vpop.f32.mrf.mxu0
        %v498 = vadd.f32 0.0, %v497
        %499 = vdwg.mxu0
        %500 = vmatpush.msra.mxu0 0.0
        %501 = vmatpush.msra.mxu0 0.0
        %502 = vmatpush.msra.mxu0 0.0
        %503 = vmatpush.msra.mxu0 0.0
        %504 = vmatpush.msra.mxu0 0.0
        %505 = vmatpush.msra.mxu0 0.0
        %506 = vmatpush.msra.mxu0 0.0
        %507 = vmatpush.msra.mxu0 0.0
        %508 = vmatpush.msra.mxu0 0.0
        %509 = vmatpush.msra.mxu0 0.0
        %510 = vmatpush.msra.mxu0 0.0
        %511 = vmatpush.msra.mxu0 0.0
        %512 = vmatpush.msra.mxu0 0.0
        %513 = vmatpush.msra.mxu0 0.0
        %514 = vmatpush.msra.mxu0 0.0
        %515 = vmatpush.msra.mxu0 %v443
        %516 = vmatmul.f32.gmra.mxu0 %v449
        %v517 = vpop.f32.mrf.mxu0
        %v518 = vadd.f32 0.0, %v517
        %519 = vmatmul.f32.gmra.mxu0 %v452
        %v520 = vpop.f32.mrf.mxu0
        %v521 = vadd.f32 0.0, %v520
        %522 = vdwg.mxu0
        %523 = vmatpush.msra.mxu0 0.0
        %524 = vmatpush.msra.mxu0 0.0
        %525 = vmatpush.msra.mxu0 0.0
        %526 = vmatpush.msra.mxu0 0.0
        %527 = vmatpush.msra.mxu0 0.0
        %528 = vmatpush.msra.mxu0 0.0
        %529 = vmatpush.msra.mxu0 0.0
        %530 = vmatpush.msra.mxu0 0.0
        %531 = vmatpush.msra.mxu0 0.0
        %532 = vmatpush.msra.mxu0 0.0
        %533 = vmatpush.msra.mxu0 0.0
        %534 = vmatpush.msra.mxu0 0.0
        %535 = vmatpush.msra.mxu0 0.0
        %536 = vmatpush.msra.mxu0 0.0
        %537 = vmatpush.msra.mxu0 0.0
        %538 = vmatpush.msra.mxu0 %v444
        %539 = vmatmul.f32.gmra.mxu0 %v449
        %v540 = vpop.f32.mrf.mxu0
        %v541 = vadd.f32 0.0, %v540
        %542 = vmatmul.f32.gmra.mxu0 %v452
        %v543 = vpop.f32.mrf.mxu0
        %v544 = vadd.f32 0.0, %v543
        %545 = vdwg.mxu0
        %546 = vmatpush.msra.mxu0 0.0
        %547 = vmatpush.msra.mxu0 0.0
        %548 = vmatpush.msra.mxu0 0.0
        %549 = vmatpush.msra.mxu0 0.0
        %550 = vmatpush.msra.mxu0 0.0
        %551 = vmatpush.msra.mxu0 0.0
        %552 = vmatpush.msra.mxu0 0.0
        %553 = vmatpush.msra.mxu0 0.0
        %554 = vmatpush.msra.mxu0 0.0
        %555 = vmatpush.msra.mxu0 0.0
        %556 = vmatpush.msra.mxu0 0.0
        %557 = vmatpush.msra.mxu0 0.0
        %558 = vmatpush.msra.mxu0 0.0
        %559 = vmatpush.msra.mxu0 0.0
        %560 = vmatpush.msra.mxu0 0.0
        %561 = vmatpush.msra.mxu0 %v445
        %562 = vmatmul.f32.gmra.mxu0 %v449
        %v563 = vpop.f32.mrf.mxu0
        %v564 = vadd.f32 0.0, %v563
        %565 = vmatmul.f32.gmra.mxu0 %v452
        %v566 = vpop.f32.mrf.mxu0
        %v567 = vadd.f32 0.0, %v566
        %568 = vdwg.mxu0
        %569 = vmatpush.msra.mxu0 0.0
        %570 = vmatpush.msra.mxu0 0.0
        %571 = vmatpush.msra.mxu0 0.0
        %572 = vmatpush.msra.mxu0 0.0
        %573 = vmatpush.msra.mxu0 0.0
        %574 = vmatpush.msra.mxu0 0.0
        %575 = vmatpush.msra.mxu0 0.0
        %576 = vmatpush.msra.mxu0 0.0
        %577 = vmatpush.msra.mxu0 0.0
        %578 = vmatpush.msra.mxu0 0.0
        %579 = vmatpush.msra.mxu0 0.0
        %580 = vmatpush.msra.mxu0 0.0
        %581 = vmatpush.msra.mxu0 0.0
        %582 = vmatpush.msra.mxu0 0.0
        %583 = vmatpush.msra.mxu0 0.0
        %584 = vmatpush.msra.mxu0 %v446
        %585 = vmatmul.f32.gmra.mxu0 %v449
        %v586 = vpop.f32.mrf.mxu0
        %v587 = vadd.f32 0.0, %v586
        %588 = vmatmul.f32.gmra.mxu0 %v452
        %v589 = vpop.f32.mrf.mxu0
        %v590 = vadd.f32 0.0, %v589
        %591 = vdwg.mxu0
        %v593 = vsel %vm447, %v431, 0
        %v596 = vsel %vm447, %v432, 0
        %598 = vmatpush.msra.mxu0 0.0
        %599 = vmatpush.msra.mxu0 0.0
        %600 = vmatpush.msra.mxu0 0.0
        %601 = vmatpush.msra.mxu0 0.0
        %602 = vmatpush.msra.mxu0 0.0
        %603 = vmatpush.msra.mxu0 0.0
        %604 = vmatpush.msra.mxu0 0.0
        %605 = vmatpush.msra.mxu0 0.0
        %606 = vmatpush.msra.mxu0 0.0
        %607 = vmatpush.msra.mxu0 0.0
        %608 = vmatpush.msra.mxu0 0.0
        %609 = vmatpush.msra.mxu0 0.0
        %610 = vmatpush.msra.mxu0 0.0
        %611 = vmatpush.msra.mxu0 0.0
        %612 = vmatpush.msra.mxu0 0.0
        %613 = vmatpush.msra.mxu0 %v433
        %614 = vmatmul.f32.gmra.mxu0 %v593
        %v615 = vpop.f32.mrf.mxu0
        %v616 = vadd.f32 %v472, %v615
        %617 = vmatmul.f32.gmra.mxu0 %v596
        %v618 = vpop.f32.mrf.mxu0
        %v619 = vadd.f32 %v475, %v618
        %620 = vdwg.mxu0
        %621 = vmatpush.msra.mxu0 0.0
        %622 = vmatpush.msra.mxu0 0.0
        %623 = vmatpush.msra.mxu0 0.0
        %624 = vmatpush.msra.mxu0 0.0
        %625 = vmatpush.msra.mxu0 0.0
        %626 = vmatpush.msra.mxu0 0.0
        %627 = vmatpush.msra.mxu0 0.0
        %628 = vmatpush.msra.mxu0 0.0
        %629 = vmatpush.msra.mxu0 0.0
        %630 = vmatpush.msra.mxu0 0.0
        %631 = vmatpush.msra.mxu0 0.0
        %632 = vmatpush.msra.mxu0 0.0
        %633 = vmatpush.msra.mxu0 0.0
        %634 = vmatpush.msra.mxu0 0.0
        %635 = vmatpush.msra.mxu0 0.0
        %636 = vmatpush.msra.mxu0 %v434
        %637 = vmatmul.f32.gmra.mxu0 %v593
        %v638 = vpop.f32.mrf.mxu0
        %v639 = vadd.f32 %v495, %v638
        %640 = vmatmul.f32.gmra.mxu0 %v596
        %v641 = vpop.f32.mrf.mxu0
        %v642 = vadd.f32 %v498, %v641
        %643 = vdwg.mxu0
        %644 = vmatpush.msra.mxu0 0.0
        %645 = vmatpush.msra.mxu0 0.0
        %646 = vmatpush.msra.mxu0 0.0
        %647 = vmatpush.msra.mxu0 0.0
        %648 = vmatpush.msra.mxu0 0.0
        %649 = vmatpush.msra.mxu0 0.0
        %650 = vmatpush.msra.mxu0 0.0
        %651 = vmatpush.msra.mxu0 0.0
        %652 = vmatpush.msra.mxu0 0.0
        %653 = vmatpush.msra.mxu0 0.0
        %654 = vmatpush.msra.mxu0 0.0
        %655 = vmatpush.msra.mxu0 0.0
        %656 = vmatpush.msra.mxu0 0.0
        %657 = vmatpush.msra.mxu0 0.0
        %658 = vmatpush.msra.mxu0 0.0
        %659 = vmatpush.msra.mxu0 %v435
        %660 = vmatmul.f32.gmra.mxu0 %v593
        %v661 = vpop.f32.mrf.mxu0
        %v662 = vadd.f32 %v518, %v661
        %663 = vmatmul.f32.gmra.mxu0 %v596
        %v664 = vpop.f32.mrf.mxu0
        %v665 = vadd.f32 %v521, %v664
        %666 = vdwg.mxu0
        %667 = vmatpush.msra.mxu0 0.0
        %668 = vmatpush.msra.mxu0 0.0
        %669 = vmatpush.msra.mxu0 0.0
        %670 = vmatpush.msra.mxu0 0.0
        %671 = vmatpush.msra.mxu0 0.0
        %672 = vmatpush.msra.mxu0 0.0
        %673 = vmatpush.msra.mxu0 0.0
        %674 = vmatpush.msra.mxu0 0.0
        %675 = vmatpush.msra.mxu0 0.0
        %676 = vmatpush.msra.mxu0 0.0
        %677 = vmatpush.msra.mxu0 0.0
        %678 = vmatpush.msra.mxu0 0.0
        %679 = vmatpush.msra.mxu0 0.0
        %680 = vmatpush.msra.mxu0 0.0
        %681 = vmatpush.msra.mxu0 0.0
        %682 = vmatpush.msra.mxu0 %v436
        %683 = vmatmul.f32.gmra.mxu0 %v593
        %v684 = vpop.f32.mrf.mxu0
        %v685 = vadd.f32 %v541, %v684
        %686 = vmatmul.f32.gmra.mxu0 %v596
        %v687 = vpop.f32.mrf.mxu0
        %v688 = vadd.f32 %v544, %v687
        %689 = vdwg.mxu0
        %690 = vmatpush.msra.mxu0 0.0
        %691 = vmatpush.msra.mxu0 0.0
        %692 = vmatpush.msra.mxu0 0.0
        %693 = vmatpush.msra.mxu0 0.0
        %694 = vmatpush.msra.mxu0 0.0
        %695 = vmatpush.msra.mxu0 0.0
        %696 = vmatpush.msra.mxu0 0.0
        %697 = vmatpush.msra.mxu0 0.0
        %698 = vmatpush.msra.mxu0 0.0
        %699 = vmatpush.msra.mxu0 0.0
        %700 = vmatpush.msra.mxu0 0.0
        %701 = vmatpush.msra.mxu0 0.0
        %702 = vmatpush.msra.mxu0 0.0
        %703 = vmatpush.msra.mxu0 0.0
        %704 = vmatpush.msra.mxu0 0.0
        %705 = vmatpush.msra.mxu0 %v437
        %706 = vmatmul.f32.gmra.mxu0 %v593
        %v707 = vpop.f32.mrf.mxu0
        %v708 = vadd.f32 %v564, %v707
        %709 = vmatmul.f32.gmra.mxu0 %v596
        %v710 = vpop.f32.mrf.mxu0
        %v711 = vadd.f32 %v567, %v710
        %712 = vdwg.mxu0
        %713 = vmatpush.msra.mxu0 0.0
        %714 = vmatpush.msra.mxu0 0.0
        %715 = vmatpush.msra.mxu0 0.0
        %716 = vmatpush.msra.mxu0 0.0
        %717 = vmatpush.msra.mxu0 0.0
        %718 = vmatpush.msra.mxu0 0.0
        %719 = vmatpush.msra.mxu0 0.0
        %720 = vmatpush.msra.mxu0 0.0
        %721 = vmatpush.msra.mxu0 0.0
        %722 = vmatpush.msra.mxu0 0.0
        %723 = vmatpush.msra.mxu0 0.0
        %724 = vmatpush.msra.mxu0 0.0
        %725 = vmatpush.msra.mxu0 0.0
        %726 = vmatpush.msra.mxu0 0.0
        %727 = vmatpush.msra.mxu0 0.0
        %728 = vmatpush.msra.mxu0 %v438
        %729 = vmatmul.f32.gmra.mxu0 %v593
        %v730 = vpop.f32.mrf.mxu0
        %v731 = vadd.f32 %v587, %v730
        %732 = vmatmul.f32.gmra.mxu0 %v596
        %v733 = vpop.f32.mrf.mxu0
        %v734 = vadd.f32 %v590, %v733
        %735 = vdwg.mxu0
        %v736 = vld [vmem:[%s5] sm:$0xff]
        %v737 = vld [vmem:[%s5 + $0x8] sm:$0xff]
        %v738 = vld [vmem:[%s383] sm:$0xff]
        %v739 = vld [vmem:[%s383 + $0x8] sm:$0xff]
        %v740 = vld [vmem:[%s383 + $0x10] sm:$0xff]
        %v741 = vld [vmem:[%s383 + $0x18] sm:$0xff]
        %v742 = vld [vmem:[%s383 + $0x20] sm:$0xff]
        %v743 = vld [vmem:[%s383 + $0x28] sm:$0xff]
        %v745 = vsel %vm447, %v736, 0
        %v748 = vsel %vm447, %v737, 0
        %750 = vmatpush.msra.mxu0 0.0
        %751 = vmatpush.msra.mxu0 0.0
        %752 = vmatpush.msra.mxu0 0.0
        %753 = vmatpush.msra.mxu0 0.0
        %754 = vmatpush.msra.mxu0 0.0
        %755 = vmatpush.msra.mxu0 0.0
        %756 = vmatpush.msra.mxu0 0.0
        %757 = vmatpush.msra.mxu0 0.0
        %758 = vmatpush.msra.mxu0 0.0
        %759 = vmatpush.msra.mxu0 0.0
        %760 = vmatpush.msra.mxu0 0.0
        %761 = vmatpush.msra.mxu0 0.0
        %762 = vmatpush.msra.mxu0 0.0
        %763 = vmatpush.msra.mxu0 0.0
        %764 = vmatpush.msra.mxu0 0.0
        %765 = vmatpush.msra.mxu0 %v738
        %766 = vmatmul.f32.gmra.mxu0 %v745
        %v767 = vpop.f32.mrf.mxu0
        %v768 = vadd.f32 0.0, %v767
        %769 = vmatmul.f32.gmra.mxu0 %v748
        %v770 = vpop.f32.mrf.mxu0
        %v771 = vadd.f32 0.0, %v770
        %772 = vdwg.mxu0
        %773 = vmatpush.msra.mxu0 0.0
        %774 = vmatpush.msra.mxu0 0.0
        %775 = vmatpush.msra.mxu0 0.0
        %776 = vmatpush.msra.mxu0 0.0
        %777 = vmatpush.msra.mxu0 0.0
        %778 = vmatpush.msra.mxu0 0.0
        %779 = vmatpush.msra.mxu0 0.0
        %780 = vmatpush.msra.mxu0 0.0
        %781 = vmatpush.msra.mxu0 0.0
        %782 = vmatpush.msra.mxu0 0.0
        %783 = vmatpush.msra.mxu0 0.0
        %784 = vmatpush.msra.mxu0 0.0
        %785 = vmatpush.msra.mxu0 0.0
        %786 = vmatpush.msra.mxu0 0.0
        %787 = vmatpush.msra.mxu0 0.0
        %788 = vmatpush.msra.mxu0 %v739
        %789 = vmatmul.f32.gmra.mxu0 %v745
        %v790 = vpop.f32.mrf.mxu0
        %v791 = vadd.f32 0.0, %v790
        %792 = vmatmul.f32.gmra.mxu0 %v748
        %v793 = vpop.f32.mrf.mxu0
        %v794 = vadd.f32 0.0, %v793
        %795 = vdwg.mxu0
        %796 = vmatpush.msra.mxu0 0.0
        %797 = vmatpush.msra.mxu0 0.0
        %798 = vmatpush.msra.mxu0 0.0
        %799 = vmatpush.msra.mxu0 0.0
        %800 = vmatpush.msra.mxu0 0.0
        %801 = vmatpush.msra.mxu0 0.0
        %802 = vmatpush.msra.mxu0 0.0
        %803 = vmatpush.msra.mxu0 0.0
        %804 = vmatpush.msra.mxu0 0.0
        %805 = vmatpush.msra.mxu0 0.0
        %806 = vmatpush.msra.mxu0 0.0
        %807 = vmatpush.msra.mxu0 0.0
        %808 = vmatpush.msra.mxu0 0.0
        %809 = vmatpush.msra.mxu0 0.0
        %810 = vmatpush.msra.mxu0 0.0
        %811 = vmatpush.msra.mxu0 %v740
        %812 = vmatmul.f32.gmra.mxu0 %v745
        %v813 = vpop.f32.mrf.mxu0
        %v814 = vadd.f32 0.0, %v813
        %815 = vmatmul.f32.gmra.mxu0 %v748
        %v816 = vpop.f32.mrf.mxu0
        %v817 = vadd.f32 0.0, %v816
        %818 = vdwg.mxu0
        %819 = vmatpush.msra.mxu0 0.0
        %820 = vmatpush.msra.mxu0 0.0
        %821 = vmatpush.msra.mxu0 0.0
        %822 = vmatpush.msra.mxu0 0.0
        %823 = vmatpush.msra.mxu0 0.0
        %824 = vmatpush.msra.mxu0 0.0
        %825 = vmatpush.msra.mxu0 0.0
        %826 = vmatpush.msra.mxu0 0.0
        %827 = vmatpush.msra.mxu0 0.0
        %828 = vmatpush.msra.mxu0 0.0
        %829 = vmatpush.msra.mxu0 0.0
        %830 = vmatpush.msra.mxu0 0.0
        %831 = vmatpush.msra.mxu0 0.0
        %832 = vmatpush.msra.mxu0 0.0
        %833 = vmatpush.msra.mxu0 0.0
        %834 = vmatpush.msra.mxu0 %v741
        %835 = vmatmul.f32.gmra.mxu0 %v745
        %v836 = vpop.f32.mrf.mxu0
        %v837 = vadd.f32 0.0, %v836
        %838 = vmatmul.f32.gmra.mxu0 %v748
        %v839 = vpop.f32.mrf.mxu0
        %v840 = vadd.f32 0.0, %v839
        %841 = vdwg.mxu0
        %842 = vmatpush.msra.mxu0 0.0
        %843 = vmatpush.msra.mxu0 0.0
        %844 = vmatpush.msra.mxu0 0.0
        %845 = vmatpush.msra.mxu0 0.0
        %846 = vmatpush.msra.mxu0 0.0
        %847 = vmatpush.msra.mxu0 0.0
        %848 = vmatpush.msra.mxu0 0.0
        %849 = vmatpush.msra.mxu0 0.0
        %850 = vmatpush.msra.mxu0 0.0
        %851 = vmatpush.msra.mxu0 0.0
        %852 = vmatpush.msra.mxu0 0.0
        %853 = vmatpush.msra.mxu0 0.0
        %854 = vmatpush.msra.mxu0 0.0
        %855 = vmatpush.msra.mxu0 0.0
        %856 = vmatpush.msra.mxu0 0.0
        %857 = vmatpush.msra.mxu0 %v742
        %858 = vmatmul.f32.gmra.mxu0 %v745
        %v859 = vpop.f32.mrf.mxu0
        %v860 = vadd.f32 0.0, %v859
        %861 = vmatmul.f32.gmra.mxu0 %v748
        %v862 = vpop.f32.mrf.mxu0
        %v863 = vadd.f32 0.0, %v862
        %864 = vdwg.mxu0
        %865 = vmatpush.msra.mxu0 0.0
        %866 = vmatpush.msra.mxu0 0.0
        %867 = vmatpush.msra.mxu0 0.0
        %868 = vmatpush.msra.mxu0 0.0
        %869 = vmatpush.msra.mxu0 0.0
        %870 = vmatpush.msra.mxu0 0.0
        %871 = vmatpush.msra.mxu0 0.0
        %872 = vmatpush.msra.mxu0 0.0
        %873 = vmatpush.msra.mxu0 0.0
        %874 = vmatpush.msra.mxu0 0.0
        %875 = vmatpush.msra.mxu0 0.0
        %876 = vmatpush.msra.mxu0 0.0
        %877 = vmatpush.msra.mxu0 0.0
        %878 = vmatpush.msra.mxu0 0.0
        %879 = vmatpush.msra.mxu0 0.0
        %880 = vmatpush.msra.mxu0 %v743
        %881 = vmatmul.f32.gmra.mxu0 %v745
        %v882 = vpop.f32.mrf.mxu0
        %v883 = vadd.f32 0.0, %v882
        %884 = vmatmul.f32.gmra.mxu0 %v748
        %v885 = vpop.f32.mrf.mxu0
        %v886 = vadd.f32 0.0, %v885
        %887 = vdwg.mxu0
        %v888 = vadd.f32 %v616, %v768
        %v889 = vadd.f32 %v639, %v791
        %v890 = vadd.f32 %v662, %v814
        %v891 = vadd.f32 %v685, %v837
        %v892 = vadd.f32 %v708, %v860
        %v893 = vadd.f32 %v731, %v883
        %v894 = vadd.f32 %v619, %v771
        %v895 = vadd.f32 %v642, %v794
        %v896 = vadd.f32 %v665, %v817
        %v897 = vadd.f32 %v688, %v840
        %v898 = vadd.f32 %v711, %v863
        %v899 = vadd.f32 %v734, %v886
        %v900 = vld [vmem:[%s6] sm:$0xff]
        %v901 = vld [vmem:[%s6 + $0x8] sm:$0xff]
        %903 = vset.pattern.permute.xlu0 0
        %904 = vperm.xlu0 %903, %v900
        %v905 = vpop.permute.xlu0 %904
        %908 = vset.pattern.permute.xlu0 0
        %909 = vperm.xlu0 %908, %v901
        %v910 = vpop.permute.xlu0 %909
        %v912 = vmul.f32 %v888, %v905
        %v913 = vmul.f32 %v889, %v905
        %v914 = vmul.f32 %v890, %v905
        %v915 = vmul.f32 %v891, %v905
        %v916 = vmul.f32 %v892, %v905
        %v917 = vmul.f32 %v893, %v905
        %v918 = vmul.f32 %v894, %v910
        %v919 = vmul.f32 %v895, %v910
        %v920 = vmul.f32 %v896, %v910
        %v921 = vmul.f32 %v897, %v910
        %v922 = vmul.f32 %v898, %v910
        %v923 = vmul.f32 %v899, %v910
        %v924 = vld [vmem:[%s7] sm:$0xff]
        %v925 = vld [vmem:[%s7 + $0x8] sm:$0xff]
        %927 = vset.pattern.permute.xlu0 0
        %928 = vperm.xlu0 %927, %v924
        %v929 = vpop.permute.xlu0 %928
        %932 = vset.pattern.permute.xlu0 0
        %933 = vperm.xlu0 %932, %v925
        %v934 = vpop.permute.xlu0 %933
        %v936 = vadd.f32 %v912, %v929
        %v937 = vadd.f32 %v913, %v929
        %v938 = vadd.f32 %v914, %v929
        %v939 = vadd.f32 %v915, %v929
        %v940 = vadd.f32 %v916, %v929
        %v941 = vadd.f32 %v917, %v929
        %v942 = vadd.f32 %v918, %v934
        %v943 = vadd.f32 %v919, %v934
        %v944 = vadd.f32 %v920, %v934
        %v945 = vadd.f32 %v921, %v934
        %v946 = vadd.f32 %v922, %v934
        %v947 = vadd.f32 %v923, %v934
        %v948 = vmul.f32 %v936, 0.5
        %v949 = vmul.f32 %v937, 0.5
        %v950 = vmul.f32 %v938, 0.5
        %v951 = vmul.f32 %v939, 0.5
        %v952 = vmul.f32 %v940, 0.5
        %v953 = vmul.f32 %v941, 0.5
        %v954 = vmul.f32 %v942, 0.5
        %v955 = vmul.f32 %v943, 0.5
        %v956 = vmul.f32 %v944, 0.5
        %v957 = vmul.f32 %v945, 0.5
        %v958 = vmul.f32 %v946, 0.5
        %v959 = vmul.f32 %v947, 0.5
        %v960 = vmul.f32 %v936, 0.70710677
        %v961 = vmul.f32 %v937, 0.70710677
        %v962 = vmul.f32 %v938, 0.70710677
        %v963 = vmul.f32 %v939, 0.70710677
        %v964 = vmul.f32 %v940, 0.70710677
        %v965 = vmul.f32 %v941, 0.70710677
        %v966 = vmul.f32 %v942, 0.70710677
        %v967 = vmul.f32 %v943, 0.70710677
        %v968 = vmul.f32 %v944, 0.70710677
        %v969 = vmul.f32 %v945, 0.70710677
        %v970 = vmul.f32 %v946, 0.70710677
        %v971 = vmul.f32 %v947, 0.70710677
        %vm972 = vcmp.lt.f32.partialorder %v960, 0.0
        %vm973 = vcmp.lt.f32.partialorder %v961, 0.0
        %vm974 = vcmp.lt.f32.partialorder %v962, 0.0
        %vm975 = vcmp.lt.f32.partialorder %v963, 0.0
        %vm976 = vcmp.lt.f32.partialorder %v964, 0.0
        %vm977 = vcmp.lt.f32.partialorder %v965, 0.0
        %vm978 = vcmp.lt.f32.partialorder %v966, 0.0
        %vm979 = vcmp.lt.f32.partialorder %v967, 0.0
        %vm980 = vcmp.lt.f32.partialorder %v968, 0.0
        %vm981 = vcmp.lt.f32.partialorder %v969, 0.0
        %vm982 = vcmp.lt.f32.partialorder %v970, 0.0
        %vm983 = vcmp.lt.f32.partialorder %v971, 0.0
        %v984 = vsel %vm972, -1.0, 1.0
        %v985 = vsel %vm973, -1.0, 1.0
        %v986 = vsel %vm974, -1.0, 1.0
        %v987 = vsel %vm975, -1.0, 1.0
        %v988 = vsel %vm976, -1.0, 1.0
        %v989 = vsel %vm977, -1.0, 1.0
        %v990 = vsel %vm978, -1.0, 1.0
        %v991 = vsel %vm979, -1.0, 1.0
        %v992 = vsel %vm980, -1.0, 1.0
        %v993 = vsel %vm981, -1.0, 1.0
        %v994 = vsel %vm982, -1.0, 1.0
        %v995 = vsel %vm983, -1.0, 1.0
        %v996 = vand.u32 2147483647, %v960
        %v997 = vand.u32 2147483647, %v961
        %v998 = vand.u32 2147483647, %v962
        %v999 = vand.u32 2147483647, %v963
        %v1000 = vand.u32 2147483647, %v964
        %v1001 = vand.u32 2147483647, %v965
        %v1002 = vand.u32 2147483647, %v966
        %v1003 = vand.u32 2147483647, %v967
        %v1004 = vand.u32 2147483647, %v968
        %v1005 = vand.u32 2147483647, %v969
        %v1006 = vand.u32 2147483647, %v970
        %v1007 = vand.u32 2147483647, %v971
        %v1008 = vmul.f32 %v996, 0.3275911
        %v1009 = vmul.f32 %v997, 0.3275911
        %v1010 = vmul.f32 %v998, 0.3275911
        %v1011 = vmul.f32 %v999, 0.3275911
        %v1012 = vmul.f32 %v1000, 0.3275911
        %v1013 = vmul.f32 %v1001, 0.3275911
        %v1014 = vmul.f32 %v1002, 0.3275911
        %v1015 = vmul.f32 %v1003, 0.3275911
        %v1016 = vmul.f32 %v1004, 0.3275911
        %v1017 = vmul.f32 %v1005, 0.3275911
        %v1018 = vmul.f32 %v1006, 0.3275911
        %v1019 = vmul.f32 %v1007, 0.3275911
        %v1020 = vadd.f32 %v1008, 1.0
        %v1021 = vadd.f32 %v1009, 1.0
        %v1022 = vadd.f32 %v1010, 1.0
        %v1023 = vadd.f32 %v1011, 1.0
        %v1024 = vadd.f32 %v1012, 1.0
        %v1025 = vadd.f32 %v1013, 1.0
        %v1026 = vadd.f32 %v1014, 1.0
        %v1027 = vadd.f32 %v1015, 1.0
        %v1028 = vadd.f32 %v1016, 1.0
        %v1029 = vadd.f32 %v1017, 1.0
        %v1030 = vadd.f32 %v1018, 1.0
        %v1031 = vadd.f32 %v1019, 1.0
        %v1032 = vrcp.pop %v1020
        %v1033 = vmul.f32 %v1020, %v1032
        %v1034 = vsub.f32 1.0, %v1033
        %v1035 = vmul.f32 %v1032, %v1034
        %v1036 = vadd.f32 %v1032, %v1035
        %vm1037 = vweird.f32 %v1020
        %vm1038 = vweird.f32 %v1032
        %vm1039 = vmor %vm1037, %vm1038
        %v1040 = vsel %vm1039, %v1032, %v1036
        %v1041 = vand.u32 2147483647, %v1020
        %vm1042 = vcmp.eq.f32.partialorder %v1041, 8.507059e+37
        %v1043 = vand.u32 %v1020, 2147483648
        %v1044 = vor.u32 1.1754944e-38, %v1043
        %v1045 = vsel %vm1042, %v1044, %v1040
        %v1046 = vmul.f32 1.0, %v1045
        %v1047 = vrcp.pop %v1021
        %v1048 = vmul.f32 %v1021, %v1047
        %v1049 = vsub.f32 1.0, %v1048
        %v1050 = vmul.f32 %v1047, %v1049
        %v1051 = vadd.f32 %v1047, %v1050
        %vm1052 = vweird.f32 %v1021
        %vm1053 = vweird.f32 %v1047
        %vm1054 = vmor %vm1052, %vm1053
        %v1055 = vsel %vm1054, %v1047, %v1051
        %v1056 = vand.u32 2147483647, %v1021
        %vm1057 = vcmp.eq.f32.partialorder %v1056, 8.507059e+37
        %v1058 = vand.u32 %v1021, 2147483648
        %v1059 = vor.u32 1.1754944e-38, %v1058
        %v1060 = vsel %vm1057, %v1059, %v1055
        %v1061 = vmul.f32 1.0, %v1060
        %v1062 = vrcp.pop %v1022
        %v1063 = vmul.f32 %v1022, %v1062
        %v1064 = vsub.f32 1.0, %v1063
        %v1065 = vmul.f32 %v1062, %v1064
        %v1066 = vadd.f32 %v1062, %v1065
        %vm1067 = vweird.f32 %v1022
        %vm1068 = vweird.f32 %v1062
        %vm1069 = vmor %vm1067, %vm1068
        %v1070 = vsel %vm1069, %v1062, %v1066
        %v1071 = vand.u32 2147483647, %v1022
        %vm1072 = vcmp.eq.f32.partialorder %v1071, 8.507059e+37
        %v1073 = vand.u32 %v1022, 2147483648
        %v1074 = vor.u32 1.1754944e-38, %v1073
        %v1075 = vsel %vm1072, %v1074, %v1070
        %v1076 = vmul.f32 1.0, %v1075
        %v1077 = vrcp.pop %v1023
        %v1078 = vmul.f32 %v1023, %v1077
        %v1079 = vsub.f32 1.0, %v1078
        %v1080 = vmul.f32 %v1077, %v1079
        %v1081 = vadd.f32 %v1077, %v1080
        %vm1082 = vweird.f32 %v1023
        %vm1083 = vweird.f32 %v1077
        %vm1084 = vmor %vm1082, %vm1083
        %v1085 = vsel %vm1084, %v1077, %v1081
        %v1086 = vand.u32 2147483647, %v1023
        %vm1087 = vcmp.eq.f32.partialorder %v1086, 8.507059e+37
        %v1088 = vand.u32 %v1023, 2147483648
        %v1089 = vor.u32 1.1754944e-38, %v1088
        %v1090 = vsel %vm1087, %v1089, %v1085
        %v1091 = vmul.f32 1.0, %v1090
        %v1092 = vrcp.pop %v1024
        %v1093 = vmul.f32 %v1024, %v1092
        %v1094 = vsub.f32 1.0, %v1093
        %v1095 = vmul.f32 %v1092, %v1094
        %v1096 = vadd.f32 %v1092, %v1095
        %vm1097 = vweird.f32 %v1024
        %vm1098 = vweird.f32 %v1092
        %vm1099 = vmor %vm1097, %vm1098
        %v1100 = vsel %vm1099, %v1092, %v1096
        %v1101 = vand.u32 2147483647, %v1024
        %vm1102 = vcmp.eq.f32.partialorder %v1101, 8.507059e+37
        %v1103 = vand.u32 %v1024, 2147483648
        %v1104 = vor.u32 1.1754944e-38, %v1103
        %v1105 = vsel %vm1102, %v1104, %v1100
        %v1106 = vmul.f32 1.0, %v1105
        %v1107 = vrcp.pop %v1025
        %v1108 = vmul.f32 %v1025, %v1107
        %v1109 = vsub.f32 1.0, %v1108
        %v1110 = vmul.f32 %v1107, %v1109
        %v1111 = vadd.f32 %v1107, %v1110
        %vm1112 = vweird.f32 %v1025
        %vm1113 = vweird.f32 %v1107
        %vm1114 = vmor %vm1112, %vm1113
        %v1115 = vsel %vm1114, %v1107, %v1111
        %v1116 = vand.u32 2147483647, %v1025
        %vm1117 = vcmp.eq.f32.partialorder %v1116, 8.507059e+37
        %v1118 = vand.u32 %v1025, 2147483648
        %v1119 = vor.u32 1.1754944e-38, %v1118
        %v1120 = vsel %vm1117, %v1119, %v1115
        %v1121 = vmul.f32 1.0, %v1120
        %v1122 = vrcp.pop %v1026
        %v1123 = vmul.f32 %v1026, %v1122
        %v1124 = vsub.f32 1.0, %v1123
        %v1125 = vmul.f32 %v1122, %v1124
        %v1126 = vadd.f32 %v1122, %v1125
        %vm1127 = vweird.f32 %v1026
        %vm1128 = vweird.f32 %v1122
        %vm1129 = vmor %vm1127, %vm1128
        %v1130 = vsel %vm1129, %v1122, %v1126
        %v1131 = vand.u32 2147483647, %v1026
        %vm1132 = vcmp.eq.f32.partialorder %v1131, 8.507059e+37
        %v1133 = vand.u32 %v1026, 2147483648
        %v1134 = vor.u32 1.1754944e-38, %v1133
        %v1135 = vsel %vm1132, %v1134, %v1130
        %v1136 = vmul.f32 1.0, %v1135
        %v1137 = vrcp.pop %v1027
        %v1138 = vmul.f32 %v1027, %v1137
        %v1139 = vsub.f32 1.0, %v1138
        %v1140 = vmul.f32 %v1137, %v1139
        %v1141 = vadd.f32 %v1137, %v1140
        %vm1142 = vweird.f32 %v1027
        %vm1143 = vweird.f32 %v1137
        %vm1144 = vmor %vm1142, %vm1143
        %v1145 = vsel %vm1144, %v1137, %v1141
        %v1146 = vand.u32 2147483647, %v1027
        %vm1147 = vcmp.eq.f32.partialorder %v1146, 8.507059e+37
        %v1148 = vand.u32 %v1027, 2147483648
        %v1149 = vor.u32 1.1754944e-38, %v1148
        %v1150 = vsel %vm1147, %v1149, %v1145
        %v1151 = vmul.f32 1.0, %v1150
        %v1152 = vrcp.pop %v1028
        %v1153 = vmul.f32 %v1028, %v1152
        %v1154 = vsub.f32 1.0, %v1153
        %v1155 = vmul.f32 %v1152, %v1154
        %v1156 = vadd.f32 %v1152, %v1155
        %vm1157 = vweird.f32 %v1028
        %vm1158 = vweird.f32 %v1152
        %vm1159 = vmor %vm1157, %vm1158
        %v1160 = vsel %vm1159, %v1152, %v1156
        %v1161 = vand.u32 2147483647, %v1028
        %vm1162 = vcmp.eq.f32.partialorder %v1161, 8.507059e+37
        %v1163 = vand.u32 %v1028, 2147483648
        %v1164 = vor.u32 1.1754944e-38, %v1163
        %v1165 = vsel %vm1162, %v1164, %v1160
        %v1166 = vmul.f32 1.0, %v1165
        %v1167 = vrcp.pop %v1029
        %v1168 = vmul.f32 %v1029, %v1167
        %v1169 = vsub.f32 1.0, %v1168
        %v1170 = vmul.f32 %v1167, %v1169
        %v1171 = vadd.f32 %v1167, %v1170
        %vm1172 = vweird.f32 %v1029
        %vm1173 = vweird.f32 %v1167
        %vm1174 = vmor %vm1172, %vm1173
        %v1175 = vsel %vm1174, %v1167, %v1171
        %v1176 = vand.u32 2147483647, %v1029
        %vm1177 = vcmp.eq.f32.partialorder %v1176, 8.507059e+37
        %v1178 = vand.u32 %v1029, 2147483648
        %v1179 = vor.u32 1.1754944e-38, %v1178
        %v1180 = vsel %vm1177, %v1179, %v1175
        %v1181 = vmul.f32 1.0, %v1180
        %v1182 = vrcp.pop %v1030
        %v1183 = vmul.f32 %v1030, %v1182
        %v1184 = vsub.f32 1.0, %v1183
        %v1185 = vmul.f32 %v1182, %v1184
        %v1186 = vadd.f32 %v1182, %v1185
        %vm1187 = vweird.f32 %v1030
        %vm1188 = vweird.f32 %v1182
        %vm1189 = vmor %vm1187, %vm1188
        %v1190 = vsel %vm1189, %v1182, %v1186
        %v1191 = vand.u32 2147483647, %v1030
        %vm1192 = vcmp.eq.f32.partialorder %v1191, 8.507059e+37
        %v1193 = vand.u32 %v1030, 2147483648
        %v1194 = vor.u32 1.1754944e-38, %v1193
        %v1195 = vsel %vm1192, %v1194, %v1190
        %v1196 = vmul.f32 1.0, %v1195
        %v1197 = vrcp.pop %v1031
        %v1198 = vmul.f32 %v1031, %v1197
        %v1199 = vsub.f32 1.0, %v1198
        %v1200 = vmul.f32 %v1197, %v1199
        %v1201 = vadd.f32 %v1197, %v1200
        %vm1202 = vweird.f32 %v1031
        %vm1203 = vweird.f32 %v1197
        %vm1204 = vmor %vm1202, %vm1203
        %v1205 = vsel %vm1204, %v1197, %v1201
        %v1206 = vand.u32 2147483647, %v1031
        %vm1207 = vcmp.eq.f32.partialorder %v1206, 8.507059e+37
        %v1208 = vand.u32 %v1031, 2147483648
        %v1209 = vor.u32 1.1754944e-38, %v1208
        %v1210 = vsel %vm1207, %v1209, %v1205
        %v1211 = vmul.f32 1.0, %v1210
        %v1212 = vmul.f32 %v1046, 1.0614054
        %v1213 = vmul.f32 %v1061, 1.0614054
        %v1214 = vmul.f32 %v1076, 1.0614054
        %v1215 = vmul.f32 %v1091, 1.0614054
        %v1216 = vmul.f32 %v1106, 1.0614054
        %v1217 = vmul.f32 %v1121, 1.0614054
        %v1218 = vmul.f32 %v1136, 1.0614054
        %v1219 = vmul.f32 %v1151, 1.0614054
        %v1220 = vmul.f32 %v1166, 1.0614054
        %v1221 = vmul.f32 %v1181, 1.0614054
        %v1222 = vmul.f32 %v1196, 1.0614054
        %v1223 = vmul.f32 %v1211, 1.0614054
        %v1224 = vadd.f32 %v1212, -1.4531521
        %v1225 = vadd.f32 %v1213, -1.4531521
        %v1226 = vadd.f32 %v1214, -1.4531521
        %v1227 = vadd.f32 %v1215, -1.4531521
        %v1228 = vadd.f32 %v1216, -1.4531521
        %v1229 = vadd.f32 %v1217, -1.4531521
        %v1230 = vadd.f32 %v1218, -1.4531521
        %v1231 = vadd.f32 %v1219, -1.4531521
        %v1232 = vadd.f32 %v1220, -1.4531521
        %v1233 = vadd.f32 %v1221, -1.4531521
        %v1234 = vadd.f32 %v1222, -1.4531521
        %v1235 = vadd.f32 %v1223, -1.4531521
        %v1236 = vmul.f32 %v1224, %v1046
        %v1237 = vmul.f32 %v1225, %v1061
        %v1238 = vmul.f32 %v1226, %v1076
        %v1239 = vmul.f32 %v1227, %v1091
        %v1240 = vmul.f32 %v1228, %v1106
        %v1241 = vmul.f32 %v1229, %v1121
        %v1242 = vmul.f32 %v1230, %v1136
        %v1243 = vmul.f32 %v1231, %v1151
        %v1244 = vmul.f32 %v1232, %v1166
        %v1245 = vmul.f32 %v1233, %v1181
        %v1246 = vmul.f32 %v1234, %v1196
        %v1247 = vmul.f32 %v1235, %v1211
        %v1248 = vadd.f32 %v1236, 1.4214138
        %v1249 = vadd.f32 %v1237, 1.4214138
        %v1250 = vadd.f32 %v1238, 1.4214138
        %v1251 = vadd.f32 %v1239, 1.4214138
        %v1252 = vadd.f32 %v1240, 1.4214138
        %v1253 = vadd.f32 %v1241, 1.4214138
        %v1254 = vadd.f32 %v1242, 1.4214138
        %v1255 = vadd.f32 %v1243, 1.4214138
        %v1256 = vadd.f32 %v1244, 1.4214138
        %v1257 = vadd.f32 %v1245, 1.4214138
        %v1258 = vadd.f32 %v1246, 1.4214138
        %v1259 = vadd.f32 %v1247, 1.4214138
        %v1260 = vmul.f32 %v1248, %v1046
        %v1261 = vmul.f32 %v1249, %v1061
        %v1262 = vmul.f32 %v1250, %v1076
        %v1263 = vmul.f32 %v1251, %v1091
        %v1264 = vmul.f32 %v1252, %v1106
        %v1265 = vmul.f32 %v1253, %v1121
        %v1266 = vmul.f32 %v1254, %v1136
        %v1267 = vmul.f32 %v1255, %v1151
        %v1268 = vmul.f32 %v1256, %v1166
        %v1269 = vmul.f32 %v1257, %v1181
        %v1270 = vmul.f32 %v1258, %v1196
        %v1271 = vmul.f32 %v1259, %v1211
        %v1272 = vadd.f32 %v1260, -0.28449672
        %v1273 = vadd.f32 %v1261, -0.28449672
        %v1274 = vadd.f32 %v1262, -0.28449672
        %v1275 = vadd.f32 %v1263, -0.28449672
        %v1276 = vadd.f32 %v1264, -0.28449672
        %v1277 = vadd.f32 %v1265, -0.28449672
        %v1278 = vadd.f32 %v1266, -0.28449672
        %v1279 = vadd.f32 %v1267, -0.28449672
        %v1280 = vadd.f32 %v1268, -0.28449672
        %v1281 = vadd.f32 %v1269, -0.28449672
        %v1282 = vadd.f32 %v1270, -0.28449672
        %v1283 = vadd.f32 %v1271, -0.28449672
        %v1284 = vmul.f32 %v1272, %v1046
        %v1285 = vmul.f32 %v1273, %v1061
        %v1286 = vmul.f32 %v1274, %v1076
        %v1287 = vmul.f32 %v1275, %v1091
        %v1288 = vmul.f32 %v1276, %v1106
        %v1289 = vmul.f32 %v1277, %v1121
        %v1290 = vmul.f32 %v1278, %v1136
        %v1291 = vmul.f32 %v1279, %v1151
        %v1292 = vmul.f32 %v1280, %v1166
        %v1293 = vmul.f32 %v1281, %v1181
        %v1294 = vmul.f32 %v1282, %v1196
        %v1295 = vmul.f32 %v1283, %v1211
        %v1296 = vadd.f32 %v1284, 0.2548296
        %v1297 = vadd.f32 %v1285, 0.2548296
        %v1298 = vadd.f32 %v1286, 0.2548296
        %v1299 = vadd.f32 %v1287, 0.2548296
        %v1300 = vadd.f32 %v1288, 0.2548296
        %v1301 = vadd.f32 %v1289, 0.2548296
        %v1302 = vadd.f32 %v1290, 0.2548296
        %v1303 = vadd.f32 %v1291, 0.2548296
        %v1304 = vadd.f32 %v1292, 0.2548296
        %v1305 = vadd.f32 %v1293, 0.2548296
        %v1306 = vadd.f32 %v1294, 0.2548296
        %v1307 = vadd.f32 %v1295, 0.2548296
        %v1308 = vmul.f32 %v1296, %v1046
        %v1309 = vmul.f32 %v1297, %v1061
        %v1310 = vmul.f32 %v1298, %v1076
        %v1311 = vmul.f32 %v1299, %v1091
        %v1312 = vmul.f32 %v1300, %v1106
        %v1313 = vmul.f32 %v1301, %v1121
        %v1314 = vmul.f32 %v1302, %v1136
        %v1315 = vmul.f32 %v1303, %v1151
        %v1316 = vmul.f32 %v1304, %v1166
        %v1317 = vmul.f32 %v1305, %v1181
        %v1318 = vmul.f32 %v1306, %v1196
        %v1319 = vmul.f32 %v1307, %v1211
        %v1320 = vsub.f32 0.0, %v996
        %v1321 = vsub.f32 0.0, %v997
        %v1322 = vsub.f32 0.0, %v998
        %v1323 = vsub.f32 0.0, %v999
        %v1324 = vsub.f32 0.0, %v1000
        %v1325 = vsub.f32 0.0, %v1001
        %v1326 = vsub.f32 0.0, %v1002
        %v1327 = vsub.f32 0.0, %v1003
        %v1328 = vsub.f32 0.0, %v1004
        %v1329 = vsub.f32 0.0, %v1005
        %v1330 = vsub.f32 0.0, %v1006
        %v1331 = vsub.f32 0.0, %v1007
        %v1332 = vmul.f32 %v1320, %v996
        %v1333 = vmul.f32 %v1321, %v997
        %v1334 = vmul.f32 %v1322, %v998
        %v1335 = vmul.f32 %v1323, %v999
        %v1336 = vmul.f32 %v1324, %v1000
        %v1337 = vmul.f32 %v1325, %v1001
        %v1338 = vmul.f32 %v1326, %v1002
        %v1339 = vmul.f32 %v1327, %v1003
        %v1340 = vmul.f32 %v1328, %v1004
        %v1341 = vmul.f32 %v1329, %v1005
        %v1342 = vmul.f32 %v1330, %v1006
        %v1343 = vmul.f32 %v1331, %v1007
        %v1344 = vmul.f32 %v1332, 1.442695
        %v1345 = vpow.pop %v1344
        %v1346 = vmul.f32 %v1333, 1.442695
        %v1347 = vpow.pop %v1346
        %v1348 = vmul.f32 %v1334, 1.442695
        %v1349 = vpow.pop %v1348
        %v1350 = vmul.f32 %v1335, 1.442695
        %v1351 = vpow.pop %v1350
        %v1352 = vmul.f32 %v1336, 1.442695
        %v1353 = vpow.pop %v1352
        %v1354 = vmul.f32 %v1337, 1.442695
        %v1355 = vpow.pop %v1354
        %v1356 = vmul.f32 %v1338, 1.442695
        %v1357 = vpow.pop %v1356
        %v1358 = vmul.f32 %v1339, 1.442695
        %v1359 = vpow.pop %v1358
        %v1360 = vmul.f32 %v1340, 1.442695
        %v1361 = vpow.pop %v1360
        %v1362 = vmul.f32 %v1341, 1.442695
        %v1363 = vpow.pop %v1362
        %v1364 = vmul.f32 %v1342, 1.442695
        %v1365 = vpow.pop %v1364
        %v1366 = vmul.f32 %v1343, 1.442695
        %v1367 = vpow.pop %v1366
        %v1368 = vmul.f32 %v1308, %v1345
        %v1369 = vmul.f32 %v1309, %v1347
        %v1370 = vmul.f32 %v1310, %v1349
        %v1371 = vmul.f32 %v1311, %v1351
        %v1372 = vmul.f32 %v1312, %v1353
        %v1373 = vmul.f32 %v1313, %v1355
        %v1374 = vmul.f32 %v1314, %v1357
        %v1375 = vmul.f32 %v1315, %v1359
        %v1376 = vmul.f32 %v1316, %v1361
        %v1377 = vmul.f32 %v1317, %v1363
        %v1378 = vmul.f32 %v1318, %v1365
        %v1379 = vmul.f32 %v1319, %v1367
        %v1380 = vsub.f32 1.0, %v1368
        %v1381 = vsub.f32 1.0, %v1369
        %v1382 = vsub.f32 1.0, %v1370
        %v1383 = vsub.f32 1.0, %v1371
        %v1384 = vsub.f32 1.0, %v1372
        %v1385 = vsub.f32 1.0, %v1373
        %v1386 = vsub.f32 1.0, %v1374
        %v1387 = vsub.f32 1.0, %v1375
        %v1388 = vsub.f32 1.0, %v1376
        %v1389 = vsub.f32 1.0, %v1377
        %v1390 = vsub.f32 1.0, %v1378
        %v1391 = vsub.f32 1.0, %v1379
        %v1392 = vmul.f32 %v984, %v1380
        %v1393 = vmul.f32 %v985, %v1381
        %v1394 = vmul.f32 %v986, %v1382
        %v1395 = vmul.f32 %v987, %v1383
        %v1396 = vmul.f32 %v988, %v1384
        %v1397 = vmul.f32 %v989, %v1385
        %v1398 = vmul.f32 %v990, %v1386
        %v1399 = vmul.f32 %v991, %v1387
        %v1400 = vmul.f32 %v992, %v1388
        %v1401 = vmul.f32 %v993, %v1389
        %v1402 = vmul.f32 %v994, %v1390
        %v1403 = vmul.f32 %v995, %v1391
        %v1404 = vadd.f32 %v1392, 1.0
        %v1405 = vadd.f32 %v1393, 1.0
        %v1406 = vadd.f32 %v1394, 1.0
        %v1407 = vadd.f32 %v1395, 1.0
        %v1408 = vadd.f32 %v1396, 1.0
        %v1409 = vadd.f32 %v1397, 1.0
        %v1410 = vadd.f32 %v1398, 1.0
        %v1411 = vadd.f32 %v1399, 1.0
        %v1412 = vadd.f32 %v1400, 1.0
        %v1413 = vadd.f32 %v1401, 1.0
        %v1414 = vadd.f32 %v1402, 1.0
        %v1415 = vadd.f32 %v1403, 1.0
        %v1416 = vmul.f32 %v948, %v1404
        %v1417 = vmul.f32 %v949, %v1405
        %v1418 = vmul.f32 %v950, %v1406
        %v1419 = vmul.f32 %v951, %v1407
        %v1420 = vmul.f32 %v952, %v1408
        %v1421 = vmul.f32 %v953, %v1409
        %v1422 = vmul.f32 %v954, %v1410
        %v1423 = vmul.f32 %v955, %v1411
        %v1424 = vmul.f32 %v956, %v1412
        %v1425 = vmul.f32 %v957, %v1413
        %v1426 = vmul.f32 %v958, %v1414
        %v1427 = vmul.f32 %v959, %v1415
        %1428 = vst [vmem:[%s426] sm:$0xff] %v1416
        %1429 = vst [vmem:[%s426 + $0x8] sm:$0xff] %v1417
        %1430 = vst [vmem:[%s426 + $0x10] sm:$0xff] %v1418
        %1431 = vst [vmem:[%s426 + $0x18] sm:$0xff] %v1419
        %1432 = vst [vmem:[%s426 + $0x20] sm:$0xff] %v1420
        %1433 = vst [vmem:[%s426 + $0x28] sm:$0xff] %v1421
        %1434 = vst [vmem:[%s426 + $0x30] sm:$0xff] %v1422
        %1435 = vst [vmem:[%s426 + $0x38] sm:$0xff] %v1423
        %1436 = vst [vmem:[%s426 + $0x40] sm:$0xff] %v1424
        %1437 = vst [vmem:[%s426 + $0x48] sm:$0xff] %v1425
        %1438 = vst [vmem:[%s426 + $0x50] sm:$0xff] %v1426
        %1439 = vst [vmem:[%s426 + $0x58] sm:$0xff] %v1427
        %s1440 = sand.u32 %s239, 1
        %s1441 = scalar_lea.sflag [#allocation4], %s1440
        %s1442 = sand.u32 %s239, 1
        %s1443 = smul.addr %s1442, 96
        %s1444 = scalar_lea.vmem [#allocation8], %s1443
        // Predicated region
        $region65: #{tpu_custom_call.1} parent=51 // pred_check
          %p1445 = pneg %p249
        $region66: #{tpu_custom_call.1} parent=51 // pred_check_branch
          %1447 = sbr.rel (%p1445) target = $region68
        $region67: #{tpu_custom_call.1} parent=51 // pred_region
          %s1448 = smul.u32 6, %s33
          %1450 = vsyncadd %s1441, 0
          %s1451 = smul.addr %s32, 24
          %s1452 = sadd.s32 %s1448, %s1451
          %s1453 = smul.addr %s1452, 8
          %s1454 = scalar_lea.hbm %s8, %s1453
          %s1455 = sshll.u32 %s1444, 4
          %s1456 = int_to_ptr.vmem [resolvable:$true] %s1455
          %s1457 = sshll.u32 %s1454, 4
          %s1458 = int_to_ptr.hbm [resolvable:$true] %s1457
          %1463 = dma.vmem_to_hbm [thread:$0]  %s1456, 1536, %s1458, %s1441, 768, 1536, 48
        $region68: #{tpu_custom_call.1} parent=51 // pred_fallthru
          _
      $region52: #{tpu_custom_call.1} parent=5 // pred_fallthru
        _
      %p1464 = scmp.le.s32.totalorder 2, %s23
      // Predicated region
      $region69: #{tpu_custom_call.1} parent=5 // pred_check
        %p1465 = pneg %p1464
      $region70: #{tpu_custom_call.1} parent=5 // pred_check_branch
        %1467 = sbr.rel (%p1465) target = $region72
      $region71: #{tpu_custom_call.1} parent=5 // pred_region
        %s1468 = ssub.s32 %s23, 2
        // Predicated region
        $region73: #{tpu_custom_call.1} parent=71 // pred_check
          %p1469 = pneg %p255
        $region74: #{tpu_custom_call.1} parent=71 // pred_check_branch
          %1471 = sbr.rel (%p1469) target = $region76
        $region75: #{tpu_custom_call.1} parent=71 // pred_region
          %s1472 = sand.u32 %s240, 1
          %s1473 = scalar_lea.sflag [#allocation4], %s1472
          %s1474 = sand.u32 %s240, 1
          %s1475 = smul.addr %s1474, 96
          %s1476 = scalar_lea.vmem [#allocation8], %s1475
          %1478 = dma.done %s1473, 1536
        $region76: #{tpu_custom_call.1} parent=71 // pred_fallthru
          _
      $region72: #{tpu_custom_call.1} parent=5 // pred_fallthru
        _
    $region6: #{tpu_custom_call.1} parent=1 // loop_footer
      %s27 = sadd.s32 1, %s23
    $region7: #{tpu_custom_call.1} parent=1 // loop_footer_branch
      %22 = sbr.rel target = $region3
    $region8: #{tpu_custom_call.1} parent=1 // loop_exit
      _
    %1479 = vsyncpa [#allocation3], 1
    %s1480 = scalar_lea.sflag [#allocation3], 1
    %1481 = vsyncpa %s1480, 1
    %1482 = vsyncpa [#allocation6], 1
    %s1483 = scalar_lea.sflag [#allocation6], 1
    %1484 = vsyncpa %s1483, 1
    %1485 = vsyncpa [#allocation4], 1
    %s1486 = scalar_lea.sflag [#allocation4], 1
    %1487 = vsyncpa %s1486, 1

</llo_original>
